<compile_context>
chip_gen: v6e
topology: v6e:2x2x1
jax: 0.10.0
libtpu: 0.0.40
codegen_flags: <defaults>
</compile_context>

<pallas_src>
import functools

import jax
import jax.numpy as jnp
from jax.experimental import pallas as pl
from jax.experimental.pallas import tpu as pltpu


def _wp_kernel(x_ref, y_ref, tri_ref, out_ref,
               sx_ref, sy_ref, sxx_ref, syy_ref, sxy_ref, wsum_ref, *,
               pearson_weight: float, total_rows: int, num_classes: int,
               block_rows: int):
    step = pl.program_id(0)
    last = pl.num_programs(0) - 1

    @pl.when(step == 0)
    def _init():
        for r in (sx_ref, sy_ref, sxx_ref, syy_ref, sxy_ref, wsum_ref):
            r[...] = jnp.zeros_like(r)

    x = x_ref[...].astype(jnp.float32)   # (TB, C)
    y = y_ref[...].astype(jnp.float32)   # (TB, C)

    # ---- Pearson partial moments (zero-padded rows contribute nothing) ----
    sx_ref[...] = sx_ref[...] + jnp.sum(x)
    sy_ref[...] = sy_ref[...] + jnp.sum(y)
    sxx_ref[...] = sxx_ref[...] + jnp.sum(x * x)
    syy_ref[...] = syy_ref[...] + jnp.sum(y * y)
    sxy_ref[...] = sxy_ref[...] + jnp.sum(x * y)

    # ---- Wasserstein-1 between per-row CDFs --------------------------------
    m = jnp.max(x, axis=-1, keepdims=True)
    e = jnp.exp(x - m)
    p = e * pl.reciprocal(jnp.sum(e, axis=-1, keepdims=True), approx=False)

    # cumsum(p) - cumsum(y) == cumsum(p - y): one MXU matmul instead of two.
    d = p - y
    cdf_diff = jnp.dot(d, tri_ref[...], preferred_element_type=jnp.float32)
    absdiff = jnp.abs(cdf_diff)

    # Static branch: only compiled when the wrapper had to zero-pad the batch.
    if total_rows % block_rows != 0:
        row = (jax.lax.broadcasted_iota(jnp.int32, absdiff.shape, 0)
               + step * block_rows)
        absdiff = jnp.where(row < total_rows, absdiff, 0.0)

    wsum_ref[...] = wsum_ref[...] + jnp.sum(absdiff)

    @pl.when(step == last)
    def _finalize():
        n = jnp.float32(total_rows * num_classes)
        sx, sy = sx_ref[...], sy_ref[...]
        sxx, syy, sxy = sxx_ref[...], syy_ref[...], sxy_ref[...]
        num = n * sxy - sx * sy
        den = jnp.sqrt((n * sxx - sx * sx) * (n * syy - sy * sy)) + jnp.float32(1e-8)
        pearson_loss = jnp.float32(1.0) - num / den
        wasserstein_loss = wsum_ref[...] / n
        out_ref[...] = (jnp.float32(pearson_weight) * pearson_loss
                        + jnp.float32(1.0 - pearson_weight) * wasserstein_loss)


def wasserstein_pearson_loss(logits: jax.Array,
                             target: jax.Array,
                             pearson_weight: float = 0.1,
                             block_rows: int = 256) -> jax.Array:
    """logits, target: (B, C). Returns scalar f32 loss."""
    assert logits.shape == target.shape and logits.ndim == 2
    B, C = logits.shape

    # Batch tile: >=256 rows fills the MXU and amortizes per-step overhead,
    # while 2 inputs x 2 pipeline buffers x TB*C*4B + C*C*4B (tri) stays far
    # under VMEM even on v7x (64 MiB).
    # TODO(synk): for very large C (>~1024) replace the (C,C) triangular
    # matmul with a log2(C)-step pltpu.roll cumsum to avoid the O(C^2) tri.
    tb = min(block_rows, B)
    if tb < B:
        assert tb % 8 == 0, "block_rows must be a multiple of 8"
    nblocks = pl.cdiv(B, tb)
    b_pad = nblocks * tb
    if b_pad != B:
        logits = jnp.pad(logits, ((0, b_pad - B), (0, 0)))
        target = jnp.pad(target, ((0, b_pad - B), (0, 0)))

    # Upper-triangular ones matrix: cumsum along classes as a single matmul.
    tri = (jnp.arange(C)[:, None] <= jnp.arange(C)[None, :]).astype(jnp.float32)

    kernel = functools.partial(
        _wp_kernel,
        pearson_weight=float(pearson_weight),
        total_rows=B, num_classes=C, block_rows=tb)

    out = pl.pallas_call(
        kernel,
        out_shape=jax.ShapeDtypeStruct((1, 1), jnp.float32),
        grid_spec=pltpu.PrefetchScalarGridSpec(
            num_scalar_prefetch=0,
            grid=(nblocks,),
            in_specs=[
                pl.BlockSpec((tb, C), lambda i: (i, 0)),
                pl.BlockSpec((tb, C), lambda i: (i, 0)),
                pl.BlockSpec((C, C), lambda i: (0, 0)),   # VMEM-resident tri
            ],
            out_specs=pl.BlockSpec((1, 1), lambda i: (0, 0)),
            scratch_shapes=[pltpu.VMEM((1, 1), jnp.float32)] * 6,
        ),
        compiler_params=pltpu.CompilerParams(
            # Single grid axis carries the cross-tile reduction -> sequential.
            dimension_semantics=("arbitrary",)),
    )(logits, target, tri)
    return out[0, 0]


def _reference(logits, target, pearson_weight=0.1):
    x = logits.astype(jnp.float32).reshape(-1)
    y = target.astype(jnp.float32).reshape(-1)
    n = x.size
    num = n * jnp.sum(x * y) - jnp.sum(x) * jnp.sum(y)
    den = jnp.sqrt((n * jnp.sum(x * x) - jnp.sum(x) ** 2)
                   * (n * jnp.sum(y * y) - jnp.sum(y) ** 2)) + 1e-8
    pearson = 1.0 - num / den
    p = jax.nn.softmax(logits.astype(jnp.float32), axis=-1)
    wass = jnp.mean(jnp.abs(jnp.cumsum(p, axis=-1)
                            - jnp.cumsum(target.astype(jnp.float32), axis=-1)))
    return pearson_weight * pearson + (1.0 - pearson_weight) * wass


if __name__ == "__main__":
    key = jax.random.PRNGKey(0)
    k1, k2 = jax.random.split(key)
    # B deliberately NOT a multiple of block_rows so the padded-tail mask path
    # and the multi-step accumulator path are both exercised (grid = (2,)).
    B, C = 384, 128
    logits = jax.random.normal(k1, (B, C), dtype=jnp.float32)
    # target is a per-row probability distribution
    target = jax.nn.softmax(jax.random.normal(k2, (B, C), dtype=jnp.float32),
                            axis=-1)

    loss = wasserstein_pearson_loss(logits, target, pearson_weight=0.1,
                                    block_rows=256)
    jax.block_until_ready(loss)

    ref = _reference(logits, target, pearson_weight=0.1)
    assert jnp.allclose(loss, ref, atol=1e-5, rtol=1e-5), (loss, ref)
    print("KERNEL_OK")
</pallas_src>

<mosaic_0001>
module attributes {stable_mosaic.version = 11 : i64} {
  func.func @_wp_kernel(%arg0: i32, %arg1: memref<256x128xf32, #tpu.memory_space<vmem>>, %arg2: memref<256x128xf32, #tpu.memory_space<vmem>>, %arg3: memref<128x128xf32, #tpu.memory_space<vmem>>, %arg4: memref<1x1xf32, #tpu.memory_space<vmem>>, %arg5: memref<1x1xf32, #tpu.memory_space<vmem>>, %arg6: memref<1x1xf32, #tpu.memory_space<vmem>>, %arg7: memref<1x1xf32, #tpu.memory_space<vmem>>, %arg8: memref<1x1xf32, #tpu.memory_space<vmem>>, %arg9: memref<1x1xf32, #tpu.memory_space<vmem>>, %arg10: memref<1x1xf32, #tpu.memory_space<vmem>>) attributes {dimension_semantics = [#tpu.dimension_semantics<arbitrary>], iteration_bounds = array<i64: 2>, scalar_prefetch = 0 : i64, scratch_operands = 6 : i64, tpu.core_type = #tpu.core_type<tc>, window_params = [{transform_indices = @transform_0, window_bounds = array<i64: 256, 128>}, {transform_indices = @transform_1, window_bounds = array<i64: 256, 128>}, {pipeline_mode = #tpu.pipeline_mode<synchronous>, transform_indices = @transform_2, window_bounds = array<i64: 128, 128>}, {pipeline_mode = #tpu.pipeline_mode<synchronous>, transform_indices = @transform_3, window_bounds = array<i64: 1, 1>}]} {
    %c0_i32 = arith.constant 0 : i32
    %0 = arith.cmpi eq, %arg0, %c0_i32 : i32
    %1 = arith.extui %0 : i1 to i32
    %c0_i32_0 = arith.constant 0 : i32
    %2 = arith.cmpi ne, %1, %c0_i32_0 : i32
    scf.if %2 {
      %cst_40 = arith.constant 0.000000e+00 : f32
      %81 = vector.broadcast %cst_40 : f32 to vector<1x1xf32>
      %c0_41 = arith.constant 0 : index
      %c0_42 = arith.constant 0 : index
      %82 = vector.load %arg5[%c0_41, %c0_42] : memref<1x1xf32, #tpu.memory_space<vmem>>, vector<1x1xf32>
      tpu.vector_store %arg5[%c0_41, %c0_42], %81 {strides = array<i32>} : memref<1x1xf32, #tpu.memory_space<vmem>>, vector<1x1xf32>,
      %cst_43 = arith.constant 0.000000e+00 : f32
      %83 = vector.broadcast %cst_43 : f32 to vector<1x1xf32>
      %c0_44 = arith.constant 0 : index
      %c0_45 = arith.constant 0 : index
      %84 = vector.load %arg6[%c0_44, %c0_45] : memref<1x1xf32, #tpu.memory_space<vmem>>, vector<1x1xf32>
      tpu.vector_store %arg6[%c0_44, %c0_45], %83 {strides = array<i32>} : memref<1x1xf32, #tpu.memory_space<vmem>>, vector<1x1xf32>,
      %cst_46 = arith.constant 0.000000e+00 : f32
      %85 = vector.broadcast %cst_46 : f32 to vector<1x1xf32>
      %c0_47 = arith.constant 0 : index
      %c0_48 = arith.constant 0 : index
      %86 = vector.load %arg7[%c0_47, %c0_48] : memref<1x1xf32, #tpu.memory_space<vmem>>, vector<1x1xf32>
      tpu.vector_store %arg7[%c0_47, %c0_48], %85 {strides = array<i32>} : memref<1x1xf32, #tpu.memory_space<vmem>>, vector<1x1xf32>,
      %cst_49 = arith.constant 0.000000e+00 : f32
      %87 = vector.broadcast %cst_49 : f32 to vector<1x1xf32>
      %c0_50 = arith.constant 0 : index
      %c0_51 = arith.constant 0 : index
      %88 = vector.load %arg8[%c0_50, %c0_51] : memref<1x1xf32, #tpu.memory_space<vmem>>, vector<1x1xf32>
      tpu.vector_store %arg8[%c0_50, %c0_51], %87 {strides = array<i32>} : memref<1x1xf32, #tpu.memory_space<vmem>>, vector<1x1xf32>,
      %cst_52 = arith.constant 0.000000e+00 : f32
      %89 = vector.broadcast %cst_52 : f32 to vector<1x1xf32>
      %c0_53 = arith.constant 0 : index
      %c0_54 = arith.constant 0 : index
      %90 = vector.load %arg9[%c0_53, %c0_54] : memref<1x1xf32, #tpu.memory_space<vmem>>, vector<1x1xf32>
      tpu.vector_store %arg9[%c0_53, %c0_54], %89 {strides = array<i32>} : memref<1x1xf32, #tpu.memory_space<vmem>>, vector<1x1xf32>,
      %cst_55 = arith.constant 0.000000e+00 : f32
      %91 = vector.broadcast %cst_55 : f32 to vector<1x1xf32>
      %c0_56 = arith.constant 0 : index
      %c0_57 = arith.constant 0 : index
      %92 = vector.load %arg10[%c0_56, %c0_57] : memref<1x1xf32, #tpu.memory_space<vmem>>, vector<1x1xf32>
      tpu.vector_store %arg10[%c0_56, %c0_57], %91 {strides = array<i32>} : memref<1x1xf32, #tpu.memory_space<vmem>>, vector<1x1xf32>,
    } else {
    }
    %c0 = arith.constant 0 : index
    %c0_1 = arith.constant 0 : index
    %3 = vector.load %arg1[%c0, %c0_1] : memref<256x128xf32, #tpu.memory_space<vmem>>, vector<256x128xf32>
    %c0_2 = arith.constant 0 : index
    %c0_3 = arith.constant 0 : index
    %4 = vector.load %arg2[%c0_2, %c0_3] : memref<256x128xf32, #tpu.memory_space<vmem>>, vector<256x128xf32>
    %c0_4 = arith.constant 0 : index
    %c0_5 = arith.constant 0 : index
    %5 = vector.load %arg5[%c0_4, %c0_5] : memref<1x1xf32, #tpu.memory_space<vmem>>, vector<1x1xf32>
    %6 = vector.shape_cast %3 : vector<256x128xf32> to vector<1x256x128xf32>
    %cst = arith.constant dense<0.000000e+00> : vector<1xf32>
    %7 = vector.multi_reduction <add>, %6, %cst [1, 2] : vector<1x256x128xf32> to vector<1xf32>
    %8 = vector.shape_cast %7 : vector<1xf32> to vector<1x1x1xf32>
    %9 = vector.extract %8[0, 0, 0] : f32 from vector<1x1x1xf32>
    %10 = vector.broadcast %9 : f32 to vector<1x1xf32>
    %11 = arith.addf %5, %10 : vector<1x1xf32>
    %c0_6 = arith.constant 0 : index
    %c0_7 = arith.constant 0 : index
    %12 = vector.load %arg5[%c0_6, %c0_7] : memref<1x1xf32, #tpu.memory_space<vmem>>, vector<1x1xf32>
    tpu.vector_store %arg5[%c0_6, %c0_7], %11 {strides = array<i32>} : memref<1x1xf32, #tpu.memory_space<vmem>>, vector<1x1xf32>,
    %c0_8 = arith.constant 0 : index
    %c0_9 = arith.constant 0 : index
    %13 = vector.load %arg6[%c0_8, %c0_9] : memref<1x1xf32, #tpu.memory_space<vmem>>, vector<1x1xf32>
    %14 = vector.shape_cast %4 : vector<256x128xf32> to vector<1x256x128xf32>
    %cst_10 = arith.constant dense<0.000000e+00> : vector<1xf32>
    %15 = vector.multi_reduction <add>, %14, %cst_10 [1, 2] : vector<1x256x128xf32> to vector<1xf32>
    %16 = vector.shape_cast %15 : vector<1xf32> to vector<1x1x1xf32>
    %17 = vector.extract %16[0, 0, 0] : f32 from vector<1x1x1xf32>
    %18 = vector.broadcast %17 : f32 to vector<1x1xf32>
    %19 = arith.addf %13, %18 : vector<1x1xf32>
    %c0_11 = arith.constant 0 : index
    %c0_12 = arith.constant 0 : index
    %20 = vector.load %arg6[%c0_11, %c0_12] : memref<1x1xf32, #tpu.memory_space<vmem>>, vector<1x1xf32>
    tpu.vector_store %arg6[%c0_11, %c0_12], %19 {strides = array<i32>} : memref<1x1xf32, #tpu.memory_space<vmem>>, vector<1x1xf32>,
    %c0_13 = arith.constant 0 : index
    %c0_14 = arith.constant 0 : index
    %21 = vector.load %arg7[%c0_13, %c0_14] : memref<1x1xf32, #tpu.memory_space<vmem>>, vector<1x1xf32>
    %22 = arith.mulf %3, %3 : vector<256x128xf32>
    %23 = vector.shape_cast %22 : vector<256x128xf32> to vector<1x256x128xf32>
    %cst_15 = arith.constant dense<0.000000e+00> : vector<1xf32>
    %24 = vector.multi_reduction <add>, %23, %cst_15 [1, 2] : vector<1x256x128xf32> to vector<1xf32>
    %25 = vector.shape_cast %24 : vector<1xf32> to vector<1x1x1xf32>
    %26 = vector.extract %25[0, 0, 0] : f32 from vector<1x1x1xf32>
    %27 = vector.broadcast %26 : f32 to vector<1x1xf32>
    %28 = arith.addf %21, %27 : vector<1x1xf32>
    %c0_16 = arith.constant 0 : index
    %c0_17 = arith.constant 0 : index
    %29 = vector.load %arg7[%c0_16, %c0_17] : memref<1x1xf32, #tpu.memory_space<vmem>>, vector<1x1xf32>
    tpu.vector_store %arg7[%c0_16, %c0_17], %28 {strides = array<i32>} : memref<1x1xf32, #tpu.memory_space<vmem>>, vector<1x1xf32>,
    %c0_18 = arith.constant 0 : index
    %c0_19 = arith.constant 0 : index
    %30 = vector.load %arg8[%c0_18, %c0_19] : memref<1x1xf32, #tpu.memory_space<vmem>>, vector<1x1xf32>
    %31 = arith.mulf %4, %4 : vector<256x128xf32>
    %32 = vector.shape_cast %31 : vector<256x128xf32> to vector<1x256x128xf32>
    %cst_20 = arith.constant dense<0.000000e+00> : vector<1xf32>
    %33 = vector.multi_reduction <add>, %32, %cst_20 [1, 2] : vector<1x256x128xf32> to vector<1xf32>
    %34 = vector.shape_cast %33 : vector<1xf32> to vector<1x1x1xf32>
    %35 = vector.extract %34[0, 0, 0] : f32 from vector<1x1x1xf32>
    %36 = vector.broadcast %35 : f32 to vector<1x1xf32>
    %37 = arith.addf %30, %36 : vector<1x1xf32>
    %c0_21 = arith.constant 0 : index
    %c0_22 = arith.constant 0 : index
    %38 = vector.load %arg8[%c0_21, %c0_22] : memref<1x1xf32, #tpu.memory_space<vmem>>, vector<1x1xf32>
    tpu.vector_store %arg8[%c0_21, %c0_22], %37 {strides = array<i32>} : memref<1x1xf32, #tpu.memory_space<vmem>>, vector<1x1xf32>,
    %c0_23 = arith.constant 0 : index
    %c0_24 = arith.constant 0 : index
    %39 = vector.load %arg9[%c0_23, %c0_24] : memref<1x1xf32, #tpu.memory_space<vmem>>, vector<1x1xf32>
    %40 = arith.mulf %3, %4 : vector<256x128xf32>
    %41 = vector.shape_cast %40 : vector<256x128xf32> to vector<1x256x128xf32>
    %cst_25 = arith.constant dense<0.000000e+00> : vector<1xf32>
    %42 = vector.multi_reduction <add>, %41, %cst_25 [1, 2] : vector<1x256x128xf32> to vector<1xf32>
    %43 = vector.shape_cast %42 : vector<1xf32> to vector<1x1x1xf32>
    %44 = vector.extract %43[0, 0, 0] : f32 from vector<1x1x1xf32>
    %45 = vector.broadcast %44 : f32 to vector<1x1xf32>
    %46 = arith.addf %39, %45 : vector<1x1xf32>
    %c0_26 = arith.constant 0 : index
    %c0_27 = arith.constant 0 : index
    %47 = vector.load %arg9[%c0_26, %c0_27] : memref<1x1xf32, #tpu.memory_space<vmem>>, vector<1x1xf32>
    tpu.vector_store %arg9[%c0_26, %c0_27], %46 {strides = array<i32>} : memref<1x1xf32, #tpu.memory_space<vmem>>, vector<1x1xf32>,
    %cst_28 = arith.constant dense<0xFF800000> : vector<256xf32>
    %48 = vector.multi_reduction <maximumf>, %3, %cst_28 [1] : vector<256x128xf32> to vector<256xf32>
    %49 = vector.shape_cast %48 : vector<256xf32> to vector<256x1xf32>
    %50 = vector.broadcast %49 : vector<256x1xf32> to vector<256x128xf32>
    %51 = arith.subf %3, %50 : vector<256x128xf32>
    %52 = math.exp %51 : vector<256x128xf32>
    %cst_29 = arith.constant dense<0.000000e+00> : vector<256xf32>
    %53 = vector.multi_reduction <add>, %52, %cst_29 [1] : vector<256x128xf32> to vector<256xf32>
    %54 = vector.shape_cast %53 : vector<256xf32> to vector<256x1xf32>
    %55 = tpu.reciprocal %54 : vector<256x1xf32> -> vector<256x1xf32>
    %56 = vector.broadcast %55 : vector<256x1xf32> to vector<256x128xf32>
    %57 = arith.mulf %52, %56 : vector<256x128xf32>
    %58 = arith.subf %57, %4 : vector<256x128xf32>
    %c0_30 = arith.constant 0 : index
    %c0_31 = arith.constant 0 : index
    %59 = vector.load %arg3[%c0_30, %c0_31] : memref<128x128xf32, #tpu.memory_space<vmem>>, vector<128x128xf32>
    %cst_32 = arith.constant dense<0.000000e+00> : vector<256x128xf32>
    %60 = tpu.matmul %58, %59, %cst_32 {dimension_numbers = #tpu.dot_dimension_numbers<[1], [0], [0], [1], [0, 0, 1, 1], [], []>} : vector<256x128xf32>, vector<128x128xf32>, vector<256x128xf32> -> vector<256x128xf32>
    %61 = math.absf %60 : vector<256x128xf32>
    %62 = tpu.iota {dimensions = array<i32: 0>} : vector<256x128xi32>
    %c256_i32 = arith.constant 256 : i32
    %63 = arith.muli %arg0, %c256_i32 : i32
    %64 = vector.broadcast %63 : i32 to vector<256x128xi32>
    %65 = arith.addi %62, %64 : vector<256x128xi32>
    %c384_i32 = arith.constant 384 : i32
    %66 = vector.broadcast %c384_i32 : i32 to vector<256x128xi32>
    %67 = arith.cmpi slt, %65, %66 : vector<256x128xi32>
    %cst_33 = arith.constant 0.000000e+00 : f32
    %68 = vector.broadcast %cst_33 : f32 to vector<256x128xf32>
    %69 = arith.select %67, %61, %68 : vector<256x128xi1>, vector<256x128xf32>
    %c0_34 = arith.constant 0 : index
    %c0_35 = arith.constant 0 : index
    %70 = vector.load %arg10[%c0_34, %c0_35] : memref<1x1xf32, #tpu.memory_space<vmem>>, vector<1x1xf32>
    %71 = vector.shape_cast %69 : vector<256x128xf32> to vector<1x256x128xf32>
    %cst_36 = arith.constant dense<0.000000e+00> : vector<1xf32>
    %72 = vector.multi_reduction <add>, %71, %cst_36 [1, 2] : vector<1x256x128xf32> to vector<1xf32>
    %73 = vector.shape_cast %72 : vector<1xf32> to vector<1x1x1xf32>
    %74 = vector.extract %73[0, 0, 0] : f32 from vector<1x1x1xf32>
    %75 = vector.broadcast %74 : f32 to vector<1x1xf32>
    %76 = arith.addf %70, %75 : vector<1x1xf32>
    %c0_37 = arith.constant 0 : index
    %c0_38 = arith.constant 0 : index
    %77 = vector.load %arg10[%c0_37, %c0_38] : memref<1x1xf32, #tpu.memory_space<vmem>>, vector<1x1xf32>
    tpu.vector_store %arg10[%c0_37, %c0_38], %76 {strides = array<i32>} : memref<1x1xf32, #tpu.memory_space<vmem>>, vector<1x1xf32>,
    %c1_i32 = arith.constant 1 : i32
    %78 = arith.cmpi eq, %arg0, %c1_i32 : i32
    %79 = arith.extui %78 : i1 to i32
    %c0_i32_39 = arith.constant 0 : i32
    %80 = arith.cmpi ne, %79, %c0_i32_39 : i32
    scf.if %80 {
      %c0_40 = arith.constant 0 : index
      %c0_41 = arith.constant 0 : index
      %81 = vector.load %arg5[%c0_40, %c0_41] : memref<1x1xf32, #tpu.memory_space<vmem>>, vector<1x1xf32>
      %c0_42 = arith.constant 0 : index
      %c0_43 = arith.constant 0 : index
      %82 = vector.load %arg6[%c0_42, %c0_43] : memref<1x1xf32, #tpu.memory_space<vmem>>, vector<1x1xf32>
      %c0_44 = arith.constant 0 : index
      %c0_45 = arith.constant 0 : index
      %83 = vector.load %arg7[%c0_44, %c0_45] : memref<1x1xf32, #tpu.memory_space<vmem>>, vector<1x1xf32>
      %c0_46 = arith.constant 0 : index
      %c0_47 = arith.constant 0 : index
      %84 = vector.load %arg8[%c0_46, %c0_47] : memref<1x1xf32, #tpu.memory_space<vmem>>, vector<1x1xf32>
      %c0_48 = arith.constant 0 : index
      %c0_49 = arith.constant 0 : index
      %85 = vector.load %arg9[%c0_48, %c0_49] : memref<1x1xf32, #tpu.memory_space<vmem>>, vector<1x1xf32>
      %cst_50 = arith.constant 4.915200e+04 : f32
      %86 = vector.broadcast %cst_50 : f32 to vector<1x1xf32>
      %87 = arith.mulf %86, %85 : vector<1x1xf32>
      %88 = arith.mulf %81, %82 : vector<1x1xf32>
      %89 = arith.subf %87, %88 : vector<1x1xf32>
      %cst_51 = arith.constant 4.915200e+04 : f32
      %90 = vector.broadcast %cst_51 : f32 to vector<1x1xf32>
      %91 = arith.mulf %90, %83 : vector<1x1xf32>
      %92 = arith.mulf %81, %81 : vector<1x1xf32>
      %93 = arith.subf %91, %92 : vector<1x1xf32>
      %cst_52 = arith.constant 4.915200e+04 : f32
      %94 = vector.broadcast %cst_52 : f32 to vector<1x1xf32>
      %95 = arith.mulf %94, %84 : vector<1x1xf32>
      %96 = arith.mulf %82, %82 : vector<1x1xf32>
      %97 = arith.subf %95, %96 : vector<1x1xf32>
      %98 = arith.mulf %93, %97 : vector<1x1xf32>
      %99 = math.sqrt %98 : vector<1x1xf32>
      %cst_53 = arith.constant 9.99999993E-9 : f32
      %100 = vector.broadcast %cst_53 : f32 to vector<1x1xf32>
      %101 = arith.addf %99, %100 : vector<1x1xf32>
      %102 = arith.divf %89, %101 : vector<1x1xf32>
      %cst_54 = arith.constant 1.000000e+00 : f32
      %103 = vector.broadcast %cst_54 : f32 to vector<1x1xf32>
      %104 = arith.subf %103, %102 : vector<1x1xf32>
      %c0_55 = arith.constant 0 : index
      %c0_56 = arith.constant 0 : index
      %105 = vector.load %arg10[%c0_55, %c0_56] : memref<1x1xf32, #tpu.memory_space<vmem>>, vector<1x1xf32>
      %cst_57 = arith.constant 4.915200e+04 : f32
      %106 = vector.broadcast %cst_57 : f32 to vector<1x1xf32>
      %107 = arith.divf %105, %106 : vector<1x1xf32>
      %cst_58 = arith.constant 1.000000e-01 : f32
      %108 = vector.broadcast %cst_58 : f32 to vector<1x1xf32>
      %109 = arith.mulf %108, %104 : vector<1x1xf32>
      %cst_59 = arith.constant 0.899999976 : f32
      %110 = vector.broadcast %cst_59 : f32 to vector<1x1xf32>
      %111 = arith.mulf %110, %107 : vector<1x1xf32>
      %112 = arith.addf %109, %111 : vector<1x1xf32>
      %c0_60 = arith.constant 0 : index
      %c0_61 = arith.constant 0 : index
      %113 = vector.load %arg4[%c0_60, %c0_61] : memref<1x1xf32, #tpu.memory_space<vmem>>, vector<1x1xf32>
      tpu.vector_store %arg4[%c0_60, %c0_61], %112 {strides = array<i32>} : memref<1x1xf32, #tpu.memory_space<vmem>>, vector<1x1xf32>,
    } else {
    }
    return
  }
  func.func @transform_0(%arg0: i32) -> (i32, i32) {
    %c0_i32 = arith.constant 0 : i32
    %c0_i32_0 = arith.constant 0 : i32
    return %arg0, %c0_i32 : i32, i32
  }
  func.func @transform_1(%arg0: i32) -> (i32, i32) {
    %c0_i32 = arith.constant 0 : i32
    %c0_i32_0 = arith.constant 0 : i32
    return %arg0, %c0_i32 : i32, i32
  }
  func.func @transform_2(%arg0: i32) -> (i32, i32) {
    %c0_i32 = arith.constant 0 : i32
    %c0_i32_0 = arith.constant 0 : i32
    %c0_i32_1 = arith.constant 0 : i32
    return %c0_i32, %c0_i32_0 : i32, i32
  }
  func.func @transform_3(%arg0: i32) -> (i32, i32) {
    %c0_i32 = arith.constant 0 : i32
    %c0_i32_0 = arith.constant 0 : i32
    %c0_i32_1 = arith.constant 0 : i32
    return %c0_i32, %c0_i32_0 : i32, i32
  }
}

</mosaic_0001>

<llo_original>
// kernel: tpu_custom_call.1
$region0: #{tpu_custom_call.1}
  #allocation0 [shape = 'u32[]', space=smem, size = 0x4, offset = 0x4, fixed_abs, tag = 'smem constant byte address 0x4 - core index']
  #allocation1 [shape = 'u32[144,128]{1,0:T(1,128)}', space=vmem, size = 0x12000, scoped, tag = 'internal scratch']
  #allocation2 [shape = 'f32[1,1]{1,0:T(1,128)}', space=vmem, size = 0x200, scoped, tag = 'scratch operand']
  #allocation3 [shape = 'f32[1,1]{1,0:T(1,128)}', space=vmem, size = 0x200, scoped, tag = 'scratch operand']
  #allocation4 [shape = 'f32[1,1]{1,0:T(1,128)}', space=vmem, size = 0x200, scoped, tag = 'scratch operand']
  #allocation5 [shape = 'f32[1,1]{1,0:T(1,128)}', space=vmem, size = 0x200, scoped, tag = 'scratch operand']
  #allocation6 [shape = 'f32[1,1]{1,0:T(1,128)}', space=vmem, size = 0x200, scoped, tag = 'scratch operand']
  #allocation7 [shape = 'f32[1,1]{1,0:T(1,128)}', space=vmem, size = 0x200, scoped, tag = 'scratch operand']
  %s0 = inlined_call_operand.hbm [shape: f32[512,128], index: 0, kind: input, shape index: {}]
  %s1 = inlined_call_operand.hbm [shape: f32[512,128], index: 1, kind: input, shape index: {}]
  %s2 = inlined_call_operand.hbm [shape: f32[128,128], index: 2, kind: input, shape index: {}]
  %s3 = inlined_call_operand.hbm [shape: f32[1,1], index: 3, kind: output, shape index: {}]
  %s4 = sld [smem:[#allocation0]]
  $region65: #{tpu_custom_call.1} parent=0
    _
  %s6 = ssub.s32 1, %s4
  %s7 = scalar_select 0, %s6, %s4
  $region1: #{tpu_custom_call.1} parent=0
    #allocation8 [shape = 'u8[262144]{0}', space=vmem, size = 0x40000, scoped, tag = 'input window, operand 0']
    #allocation9 [shape = 's32[2]{0}', space=sflag, size = 0x8, scoped, tag = 'scoped memory for tpu_custom_call.1']
    #allocation10 [shape = 's32[2]{0}', space=sflag, size = 0x8, scoped, tag = 'scoped memory for tpu_custom_call.1']
    #allocation11 [shape = 'u8[262144]{0}', space=vmem, size = 0x40000, scoped, tag = 'input window, operand 1']
    #allocation12 [shape = 's32[2]{0}', space=sflag, size = 0x8, scoped, tag = 'scoped memory for tpu_custom_call.1']
    #allocation13 [shape = 'u8[65536]{0}', space=vmem, size = 0x10000, scoped, tag = 'input window, operand 2, single buffered']
    #allocation14 [shape = 'u8[512]{0}', space=vmem, size = 0x400, scoped, tag = 'output window, operand 0, single buffered']
    %8 = vsyncpa [#allocation9], 0
    %s9 = scalar_lea.sflag [#allocation9], 1
    %10 = vsyncpa %s9, 0
    %11 = vsyncpa [#allocation12], 0
    %s12 = scalar_lea.sflag [#allocation12], 1
    %13 = vsyncpa %s12, 0
    %14 = vsyncpa [#allocation10], 0
    loop: start=0, step=1, limit=4
    $region2: #{tpu_custom_call.1} parent=1 // loop_pre_header
      _
    $region3: #{tpu_custom_call.1} parent=1 // loop_header
      %s16 = sphi 0, %s20
      %p17 = scmp.ge.s32.totalorder %s16, 4
      %s26 = sphi 0, %s28
      %s29 = sphi 0, %s26
      %s30 = sphi 0, %s29
      %s46 = sphi 0, %s30
      %s52 = sphi 0, %s54
      %s55 = sphi 0, %s52
      %s56 = sphi 0, %s55
      %s72 = sphi 0, %s56
      %s76 = sphi 0, %s76
      %s78 = sphi 0, %s76
      %s79 = sphi 0, %s78
      %s93 = sphi 0, %s79
      %s97 = sphi 0, %s97
      %s99 = sphi 0, %s97
      %s100 = sphi 0, %s99
      %s114 = sphi 0, %s100
    $region4: #{tpu_custom_call.1} parent=1 // loop_header_branch
      %19 = sbr.rel (%p17) target = $region8
    $region5: #{tpu_custom_call.1} parent=1 // loop_body
      %s21 = ssub.s32 %s16, 1
      %s22 = ssub.s32 %s16, 2
      %s23 = sadd.s32 %s16, 1
      %s24 = ssub.s32 %s16, %s23
      %p25 = scmp.eq.s32.totalorder %s24, 0
      %s27 = sadd.s32 %s26, 1
      %s28 = scalar_select %p25, %s26, %s27
      %p31 = pneg %p25
      %p32 = scmp.eq.s32.totalorder %s16, 1
      %p33 = por %p31, %p32
      %p34 = scmp.ne.s32.totalorder %s26, %s29
      %p35 = scmp.eq.s32.totalorder %s16, 0
      %p36 = por %p34, %p35
      %p37 = scmp.ne.s32.totalorder %s26, %s29
      %p38 = scmp.eq.s32.totalorder %s21, 1
      %p39 = por %p37, %p38
      %p40 = scmp.ne.s32.totalorder %s29, %s30
      %p41 = scmp.eq.s32.totalorder %s21, 0
      %p42 = por %p40, %p41
      %p43 = scmp.ne.s32.totalorder %s29, %s30
      %p44 = scmp.eq.s32.totalorder %s22, 1
      %p45 = por %p43, %p44
      %p47 = scmp.ne.s32.totalorder %s30, %s46
      %p48 = scmp.eq.s32.totalorder %s22, 0
      %p49 = por %p47, %p48
      %s50 = ssub.s32 %s16, %s23
      %p51 = scmp.eq.s32.totalorder %s50, 0
      %s53 = sadd.s32 %s52, 1
      %s54 = scalar_select %p51, %s52, %s53
      %p57 = pneg %p51
      %p58 = scmp.eq.s32.totalorder %s16, 1
      %p59 = por %p57, %p58
      %p60 = scmp.ne.s32.totalorder %s52, %s55
      %p61 = scmp.eq.s32.totalorder %s16, 0
      %p62 = por %p60, %p61
      %p63 = scmp.ne.s32.totalorder %s52, %s55
      %p64 = scmp.eq.s32.totalorder %s21, 1
      %p65 = por %p63, %p64
      %p66 = scmp.ne.s32.totalorder %s55, %s56
      %p67 = scmp.eq.s32.totalorder %s21, 0
      %p68 = por %p66, %p67
      %p69 = scmp.ne.s32.totalorder %s55, %s56
      %p70 = scmp.eq.s32.totalorder %s22, 1
      %p71 = por %p69, %p70
      %p73 = scmp.ne.s32.totalorder %s56, %s72
      %p74 = scmp.eq.s32.totalorder %s22, 0
      %p75 = por %p73, %p74
      %s77 = sadd.s32 %s76, 1
      %p80 = scmp.eq.s32.totalorder %s16, 1
      %p81 = scmp.ne.s32.totalorder %s76, %s78
      %p82 = scmp.eq.s32.totalorder %s16, 0
      %p83 = por %p81, %p82
      %p84 = scmp.ne.s32.totalorder %s76, %s78
      %p85 = scmp.eq.s32.totalorder %s21, 1
      %p86 = por %p84, %p85
      %p87 = scmp.ne.s32.totalorder %s78, %s79
      %p88 = scmp.eq.s32.totalorder %s21, 0
      %p89 = por %p87, %p88
      %p90 = scmp.ne.s32.totalorder %s78, %s79
      %p91 = scmp.eq.s32.totalorder %s22, 1
      %p92 = por %p90, %p91
      %p94 = scmp.ne.s32.totalorder %s79, %s93
      %p95 = scmp.eq.s32.totalorder %s22, 0
      %p96 = por %p94, %p95
      %s98 = sadd.s32 %s97, 1
      %p101 = scmp.eq.s32.totalorder %s16, 1
      %p102 = scmp.ne.s32.totalorder %s97, %s99
      %p103 = scmp.eq.s32.totalorder %s16, 0
      %p104 = por %p102, %p103
      %p105 = scmp.ne.s32.totalorder %s97, %s99
      %p106 = scmp.eq.s32.totalorder %s21, 1
      %p107 = por %p105, %p106
      %p108 = scmp.ne.s32.totalorder %s99, %s100
      %p109 = scmp.eq.s32.totalorder %s21, 0
      %p110 = por %p108, %p109
      %p111 = scmp.ne.s32.totalorder %s99, %s100
      %p112 = scmp.eq.s32.totalorder %s22, 1
      %p113 = por %p111, %p112
      %p115 = scmp.ne.s32.totalorder %s100, %s114
      %p116 = scmp.eq.s32.totalorder %s22, 0
      %p117 = por %p115, %p116
      %p118 = scmp.le.s32.totalorder 1, %s16
      %p119 = scmp.lt.s32.totalorder %s16, 3
      %p120 = pnand %p118, %p119
      %p121 = pneg %p120
      // Predicated region
      $region9: #{tpu_custom_call.1} parent=5 // pred_check
        _
      $region10: #{tpu_custom_call.1} parent=5 // pred_check_branch
        %123 = sbr.rel (%p120) target = $region12
      $region11: #{tpu_custom_call.1} parent=5 // pred_region
        %s124 = ssub.s32 %s16, 1
        // Predicated region
        $region13: #{tpu_custom_call.1} parent=11 // pred_check
          %p125 = pneg %p89
        $region14: #{tpu_custom_call.1} parent=11 // pred_check_branch
          %127 = sbr.rel (%p125) target = $region16
        $region15: #{tpu_custom_call.1} parent=11 // pred_region
          %s129 = ssub.s32 2048, 2048
          %130 = vsyncadd [#allocation12], %s129
          %s131 = sshll.u32 [#allocation13], 4
          %s132 = int_to_ptr.vmem [resolvable:$true] %s131
          %137 = dma.hbm_to_vmem [thread:$0]  %s2, 2048, %s132, [#allocation12], 128, 128, 8
        $region16: #{tpu_custom_call.1} parent=11 // pred_fallthru
          _
      $region12: #{tpu_custom_call.1} parent=5 // pred_fallthru
        _
      %p138 = scmp.lt.s32.totalorder %s16, 2
      // Predicated region
      $region17: #{tpu_custom_call.1} parent=5 // pred_check
        %p139 = pneg %p138
      $region18: #{tpu_custom_call.1} parent=5 // pred_check_branch
        %141 = sbr.rel (%p139) target = $region20
      $region19: #{tpu_custom_call.1} parent=5 // pred_region
        // Predicated region
        $region21: #{tpu_custom_call.1} parent=19 // pred_check
          %p142 = pneg %p36
        $region22: #{tpu_custom_call.1} parent=19 // pred_check_branch
          %144 = sbr.rel (%p142) target = $region24
        $region23: #{tpu_custom_call.1} parent=19 // pred_region
          %s145 = sand.u32 %s26, 1
          %s146 = scalar_lea.sflag [#allocation9], %s145
          %s147 = sand.u32 %s26, 1
          %s148 = smul.addr %s147, 256
          %s149 = scalar_lea.vmem [#allocation8], %s148
          %s150 = smul.u32 32, %s16
          %s152 = ssub.s32 4096, 4096
          %153 = vsyncadd %s146, %s152
          %s154 = smul.addr %s150, 128
          %s155 = scalar_lea.hbm %s0, %s154
          %s156 = sshll.u32 %s149, 4
          %s157 = int_to_ptr.vmem [resolvable:$true] %s156
          %162 = dma.hbm_to_vmem [thread:$0]  %s155, 4096, %s157, %s146, 128, 128, 8
        $region24: #{tpu_custom_call.1} parent=19 // pred_fallthru
          _
        // Predicated region
        $region25: #{tpu_custom_call.1} parent=19 // pred_check
          %p163 = pneg %p62
        $region26: #{tpu_custom_call.1} parent=19 // pred_check_branch
          %165 = sbr.rel (%p163) target = $region28
        $region27: #{tpu_custom_call.1} parent=19 // pred_region
          %s166 = sand.u32 %s16, 1
          %s167 = scalar_lea.sflag [#allocation12], %s166
          %s168 = sand.u32 %s52, 1
          %s169 = smul.addr %s168, 256
          %s170 = scalar_lea.vmem [#allocation11], %s169
          %s171 = smul.u32 32, %s16
          %s173 = ssub.s32 4096, 4096
          %174 = vsyncadd %s167, %s173
          %s175 = smul.addr %s171, 128
          %s176 = scalar_lea.hbm %s1, %s175
          %s177 = sshll.u32 %s170, 4
          %s178 = int_to_ptr.vmem [resolvable:$true] %s177
          %183 = dma.hbm_to_vmem [thread:$0]  %s176, 4096, %s178, %s167, 128, 128, 8
        $region28: #{tpu_custom_call.1} parent=19 // pred_fallthru
          _
      $region20: #{tpu_custom_call.1} parent=5 // pred_fallthru
        _
      %p184 = scmp.le.s32.totalorder 1, %s16
      %p185 = scmp.lt.s32.totalorder %s16, 3
      %p186 = pnand %p184, %p185
      %p187 = pneg %p186
      // Predicated region
      $region29: #{tpu_custom_call.1} parent=5 // pred_check
        _
      $region30: #{tpu_custom_call.1} parent=5 // pred_check_branch
        %189 = sbr.rel (%p186) target = $region32
      $region31: #{tpu_custom_call.1} parent=5 // pred_region
        %s190 = ssub.s32 %s16, 1
        %s191 = sand.u32 %s29, 1
        %s192 = scalar_lea.sflag [#allocation9], %s191
        %s193 = sand.u32 %s29, 1
        %s194 = smul.addr %s193, 256
        %s195 = scalar_lea.vmem [#allocation8], %s194
        // Predicated region
        $region33: #{tpu_custom_call.1} parent=31 // pred_check
          %p196 = pneg %p42
        $region34: #{tpu_custom_call.1} parent=31 // pred_check_branch
          %198 = sbr.rel (%p196) target = $region36
        $region35: #{tpu_custom_call.1} parent=31 // pred_region
          %199 = dma.done %s192, 4096
        $region36: #{tpu_custom_call.1} parent=31 // pred_fallthru
          _
        %s200 = sand.u32 %s21, 1
        %s201 = scalar_lea.sflag [#allocation12], %s200
        %s202 = sand.u32 %s55, 1
        %s203 = smul.addr %s202, 256
        %s204 = scalar_lea.vmem [#allocation11], %s203
        // Predicated region
        $region37: #{tpu_custom_call.1} parent=31 // pred_check
          %p205 = pneg %p68
        $region38: #{tpu_custom_call.1} parent=31 // pred_check_branch
          %207 = sbr.rel (%p205) target = $region40
        $region39: #{tpu_custom_call.1} parent=31 // pred_region
          %208 = dma.done %s201, 4096
        $region40: #{tpu_custom_call.1} parent=31 // pred_fallthru
          _
        // Predicated region
        $region41: #{tpu_custom_call.1} parent=31 // pred_check
          %p209 = pneg %p89
        $region42: #{tpu_custom_call.1} parent=31 // pred_check_branch
          %211 = sbr.rel (%p209) target = $region44
        $region43: #{tpu_custom_call.1} parent=31 // pred_region
          %212 = dma.done [#allocation12], 2048
        $region44: #{tpu_custom_call.1} parent=31 // pred_fallthru
          _
        %s213 = sand.u32 %s29, 1
        %s214 = scalar_lea.sflag [#allocation9], %s213
        %s215 = sand.u32 %s29, 1
        %s216 = smul.addr %s215, 256
        %s217 = scalar_lea.vmem [#allocation8], %s216
        %p218 = pneg %p42
        %p219 = pneg %p39
        %s220 = sand.u32 %s21, 1
        %s221 = scalar_lea.sflag [#allocation12], %s220
        %s222 = sand.u32 %s55, 1
        %s223 = smul.addr %s222, 256
        %s224 = scalar_lea.vmem [#allocation11], %s223
        %p225 = pneg %p68
        %p226 = pneg %p65
        %p227 = pneg %p89
        %p228 = pneg %p86
        %p229 = pneg %p110
        %p230 = pneg %p107
        %s231 = smul.u32 32, %s21
        %s232 = smul.u32 32, %s21
        %p233 = scmp.eq.s32.totalorder %s21, 0
        // Predicated region
        $region45: #{tpu_custom_call.1} parent=31 // pred_check
          %p234 = pneg %p233
        $region46: #{tpu_custom_call.1} parent=31 // pred_check_branch
          %236 = sbr.rel (%p234) target = $region48
        $region47: #{tpu_custom_call.1} parent=31 // pred_region
          %vm237 = vcmask 0
          %238 = vst.msk [vmem:[#allocation2] sm:$0x1] %vm237, 0.0
          %239 = vst.msk [vmem:[#allocation3] sm:$0x1] %vm237, 0.0
          %240 = vst.msk [vmem:[#allocation4] sm:$0x1] %vm237, 0.0
          %241 = vst.msk [vmem:[#allocation5] sm:$0x1] %vm237, 0.0
          %242 = vst.msk [vmem:[#allocation6] sm:$0x1] %vm237, 0.0
          %243 = vst.msk [vmem:[#allocation7] sm:$0x1] %vm237, 0.0
        $region48: #{tpu_custom_call.1} parent=31 // pred_fallthru
          _
        %v244 = vld [vmem:[%s195] sm:$0xff]
        %v245 = vld [vmem:[%s195 + $0x8] sm:$0xff]
        %v246 = vld [vmem:[%s195 + $0x10] sm:$0xff]
        %v247 = vld [vmem:[%s195 + $0x18] sm:$0xff]
        %v248 = vld [vmem:[%s195 + $0x20] sm:$0xff]
        %v249 = vld [vmem:[%s195 + $0x28] sm:$0xff]
        %v250 = vld [vmem:[%s195 + $0x30] sm:$0xff]
        %v251 = vld [vmem:[%s195 + $0x38] sm:$0xff]
        %v252 = vld [vmem:[%s195 + $0x40] sm:$0xff]
        %v253 = vld [vmem:[%s195 + $0x48] sm:$0xff]
        %v254 = vld [vmem:[%s195 + $0x50] sm:$0xff]
        %v255 = vld [vmem:[%s195 + $0x58] sm:$0xff]
        %v256 = vld [vmem:[%s195 + $0x60] sm:$0xff]
        %v257 = vld [vmem:[%s195 + $0x68] sm:$0xff]
        %v258 = vld [vmem:[%s195 + $0x70] sm:$0xff]
        %v259 = vld [vmem:[%s195 + $0x78] sm:$0xff]
        %v260 = vld [vmem:[%s195 + $0x80] sm:$0xff]
        %v261 = vld [vmem:[%s195 + $0x88] sm:$0xff]
        %v262 = vld [vmem:[%s195 + $0x90] sm:$0xff]
        %v263 = vld [vmem:[%s195 + $0x98] sm:$0xff]
        %v264 = vld [vmem:[%s195 + $0xa0] sm:$0xff]
        %v265 = vld [vmem:[%s195 + $0xa8] sm:$0xff]
        %v266 = vld [vmem:[%s195 + $0xb0] sm:$0xff]
        %v267 = vld [vmem:[%s195 + $0xb8] sm:$0xff]
        %v268 = vld [vmem:[%s195 + $0xc0] sm:$0xff]
        %v269 = vld [vmem:[%s195 + $0xc8] sm:$0xff]
        %v270 = vld [vmem:[%s195 + $0xd0] sm:$0xff]
        %v271 = vld [vmem:[%s195 + $0xd8] sm:$0xff]
        %v272 = vld [vmem:[%s195 + $0xe0] sm:$0xff]
        %v273 = vld [vmem:[%s195 + $0xe8] sm:$0xff]
        %v274 = vld [vmem:[%s195 + $0xf0] sm:$0xff]
        %v275 = vld [vmem:[%s195 + $0xf8] sm:$0xff]
        %v276 = vld [vmem:[%s204] sm:$0xff]
        %v277 = vld [vmem:[%s204 + $0x8] sm:$0xff]
        %v278 = vld [vmem:[%s204 + $0x10] sm:$0xff]
        %v279 = vld [vmem:[%s204 + $0x18] sm:$0xff]
        %v280 = vld [vmem:[%s204 + $0x20] sm:$0xff]
        %v281 = vld [vmem:[%s204 + $0x28] sm:$0xff]
        %v282 = vld [vmem:[%s204 + $0x30] sm:$0xff]
        %v283 = vld [vmem:[%s204 + $0x38] sm:$0xff]
        %v284 = vld [vmem:[%s204 + $0x40] sm:$0xff]
        %v285 = vld [vmem:[%s204 + $0x48] sm:$0xff]
        %v286 = vld [vmem:[%s204 + $0x50] sm:$0xff]
        %v287 = vld [vmem:[%s204 + $0x58] sm:$0xff]
        %v288 = vld [vmem:[%s204 + $0x60] sm:$0xff]
        %v289 = vld [vmem:[%s204 + $0x68] sm:$0xff]
        %v290 = vld [vmem:[%s204 + $0x70] sm:$0xff]
        %v291 = vld [vmem:[%s204 + $0x78] sm:$0xff]
        %v292 = vld [vmem:[%s204 + $0x80] sm:$0xff]
        %v293 = vld [vmem:[%s204 + $0x88] sm:$0xff]
        %v294 = vld [vmem:[%s204 + $0x90] sm:$0xff]
        %v295 = vld [vmem:[%s204 + $0x98] sm:$0xff]
        %v296 = vld [vmem:[%s204 + $0xa0] sm:$0xff]
        %v297 = vld [vmem:[%s204 + $0xa8] sm:$0xff]
        %v298 = vld [vmem:[%s204 + $0xb0] sm:$0xff]
        %v299 = vld [vmem:[%s204 + $0xb8] sm:$0xff]
        %v300 = vld [vmem:[%s204 + $0xc0] sm:$0xff]
        %v301 = vld [vmem:[%s204 + $0xc8] sm:$0xff]
        %v302 = vld [vmem:[%s204 + $0xd0] sm:$0xff]
        %v303 = vld [vmem:[%s204 + $0xd8] sm:$0xff]
        %v304 = vld [vmem:[%s204 + $0xe0] sm:$0xff]
        %v305 = vld [vmem:[%s204 + $0xe8] sm:$0xff]
        %v306 = vld [vmem:[%s204 + $0xf0] sm:$0xff]
        %v307 = vld [vmem:[%s204 + $0xf8] sm:$0xff]
        %v308 = vld [vmem:[#allocation2] sm:$0x1]
        %v309 = vadd.f32 %v244, %v245
        %v310 = vadd.f32 %v309, %v246
        %v311 = vadd.f32 %v310, %v247
        %v312 = vadd.f32 %v311, %v248
        %v313 = vadd.f32 %v312, %v249
        %v314 = vadd.f32 %v313, %v250
        %v315 = vadd.f32 %v314, %v251
        %v316 = vadd.f32 %v315, %v252
        %v317 = vadd.f32 %v316, %v253
        %v318 = vadd.f32 %v317, %v254
        %v319 = vadd.f32 %v318, %v255
        %v320 = vadd.f32 %v319, %v256
        %v321 = vadd.f32 %v320, %v257
        %v322 = vadd.f32 %v321, %v258
        %v323 = vadd.f32 %v322, %v259
        %v324 = vadd.f32 %v323, %v260
        %v325 = vadd.f32 %v324, %v261
        %v326 = vadd.f32 %v325, %v262
        %v327 = vadd.f32 %v326, %v263
        %v328 = vadd.f32 %v327, %v264
        %v329 = vadd.f32 %v328, %v265
        %v330 = vadd.f32 %v329, %v266
        %v331 = vadd.f32 %v330, %v267
        %v332 = vadd.f32 %v331, %v268
        %v333 = vadd.f32 %v332, %v269
        %v334 = vadd.f32 %v333, %v270
        %v335 = vadd.f32 %v334, %v271
        %v336 = vadd.f32 %v335, %v272
        %v337 = vadd.f32 %v336, %v273
        %v338 = vadd.f32 %v337, %v274
        %v339 = vadd.f32 %v338, %v275
        %340 = vadd.xlane.f32.xlu0 %v339
        %v341 = vpop.xlane.xlu0 %340
        %v342 = vrot.slane %v341, 4
        %v343 = vadd.f32 %v341, %v342
        %v344 = vrot.slane %v343, 2
        %v345 = vadd.f32 %v343, %v344
        %v346 = vrot.slane %v345, 1
        %v347 = vadd.f32 %v345, %v346
        %s348 = vtos %v347
        %v349 = vstv %s348
        %v350 = vadd.f32 %v308, %v349
        %vm351 = vcmask 0
        %352 = vst.msk [vmem:[#allocation2] sm:$0x1] %vm351, %v350
        %v353 = vld [vmem:[#allocation3] sm:$0x1]
        %v354 = vadd.f32 %v276, %v277
        %v355 = vadd.f32 %v354, %v278
        %v356 = vadd.f32 %v355, %v279
        %v357 = vadd.f32 %v356, %v280
        %v358 = vadd.f32 %v357, %v281
        %v359 = vadd.f32 %v358, %v282
        %v360 = vadd.f32 %v359, %v283
        %v361 = vadd.f32 %v360, %v284
        %v362 = vadd.f32 %v361, %v285
        %v363 = vadd.f32 %v362, %v286
        %v364 = vadd.f32 %v363, %v287
        %v365 = vadd.f32 %v364, %v288
        %v366 = vadd.f32 %v365, %v289
        %v367 = vadd.f32 %v366, %v290
        %v368 = vadd.f32 %v367, %v291
        %v369 = vadd.f32 %v368, %v292
        %v370 = vadd.f32 %v369, %v293
        %v371 = vadd.f32 %v370, %v294
        %v372 = vadd.f32 %v371, %v295
        %v373 = vadd.f32 %v372, %v296
        %v374 = vadd.f32 %v373, %v297
        %v375 = vadd.f32 %v374, %v298
        %v376 = vadd.f32 %v375, %v299
        %v377 = vadd.f32 %v376, %v300
        %v378 = vadd.f32 %v377, %v301
        %v379 = vadd.f32 %v378, %v302
        %v380 = vadd.f32 %v379, %v303
        %v381 = vadd.f32 %v380, %v304
        %v382 = vadd.f32 %v381, %v305
        %v383 = vadd.f32 %v382, %v306
        %v384 = vadd.f32 %v383, %v307
        %385 = vadd.xlane.f32.xlu0 %v384
        %v386 = vpop.xlane.xlu0 %385
        %v387 = vrot.slane %v386, 4
        %v388 = vadd.f32 %v386, %v387
        %v389 = vrot.slane %v388, 2
        %v390 = vadd.f32 %v388, %v389
        %v391 = vrot.slane %v390, 1
        %v392 = vadd.f32 %v390, %v391
        %s393 = vtos %v392
        %v394 = vstv %s393
        %v395 = vadd.f32 %v353, %v394
        %396 = vst.msk [vmem:[#allocation3] sm:$0x1] %vm351, %v395
        %v397 = vld [vmem:[#allocation4] sm:$0x1]
        %v398 = vmul.f32 %v244, %v244
        %v399 = vmul.f32 %v245, %v245
        %v400 = vmul.f32 %v246, %v246
        %v401 = vmul.f32 %v247, %v247
        %v402 = vmul.f32 %v248, %v248
        %v403 = vmul.f32 %v249, %v249
        %v404 = vmul.f32 %v250, %v250
        %v405 = vmul.f32 %v251, %v251
        %v406 = vmul.f32 %v252, %v252
        %v407 = vmul.f32 %v253, %v253
        %v408 = vmul.f32 %v254, %v254
        %v409 = vmul.f32 %v255, %v255
        %v410 = vmul.f32 %v256, %v256
        %v411 = vmul.f32 %v257, %v257
        %v412 = vmul.f32 %v258, %v258
        %v413 = vmul.f32 %v259, %v259
        %v414 = vmul.f32 %v260, %v260
        %v415 = vmul.f32 %v261, %v261
        %v416 = vmul.f32 %v262, %v262
        %v417 = vmul.f32 %v263, %v263
        %v418 = vmul.f32 %v264, %v264
        %v419 = vmul.f32 %v265, %v265
        %v420 = vmul.f32 %v266, %v266
        %v421 = vmul.f32 %v267, %v267
        %v422 = vmul.f32 %v268, %v268
        %v423 = vmul.f32 %v269, %v269
        %v424 = vmul.f32 %v270, %v270
        %v425 = vmul.f32 %v271, %v271
        %v426 = vmul.f32 %v272, %v272
        %v427 = vmul.f32 %v273, %v273
        %v428 = vmul.f32 %v274, %v274
        %v429 = vmul.f32 %v275, %v275
        %v430 = vadd.f32 %v398, %v399
        %v431 = vadd.f32 %v430, %v400
        %v432 = vadd.f32 %v431, %v401
        %v433 = vadd.f32 %v432, %v402
        %v434 = vadd.f32 %v433, %v403
        %v435 = vadd.f32 %v434, %v404
        %v436 = vadd.f32 %v435, %v405
        %v437 = vadd.f32 %v436, %v406
        %v438 = vadd.f32 %v437, %v407
        %v439 = vadd.f32 %v438, %v408
        %v440 = vadd.f32 %v439, %v409
        %v441 = vadd.f32 %v440, %v410
        %v442 = vadd.f32 %v441, %v411
        %v443 = vadd.f32 %v442, %v412
        %v444 = vadd.f32 %v443, %v413
        %v445 = vadd.f32 %v444, %v414
        %v446 = vadd.f32 %v445, %v415
        %v447 = vadd.f32 %v446, %v416
        %v448 = vadd.f32 %v447, %v417
        %v449 = vadd.f32 %v448, %v418
        %v450 = vadd.f32 %v449, %v419
        %v451 = vadd.f32 %v450, %v420
        %v452 = vadd.f32 %v451, %v421
        %v453 = vadd.f32 %v452, %v422
        %v454 = vadd.f32 %v453, %v423
        %v455 = vadd.f32 %v454, %v424
        %v456 = vadd.f32 %v455, %v425
        %v457 = vadd.f32 %v456, %v426
        %v458 = vadd.f32 %v457, %v427
        %v459 = vadd.f32 %v458, %v428
        %v460 = vadd.f32 %v459, %v429
        %461 = vadd.xlane.f32.xlu0 %v460
        %v462 = vpop.xlane.xlu0 %461
        %v463 = vrot.slane %v462, 4
        %v464 = vadd.f32 %v462, %v463
        %v465 = vrot.slane %v464, 2
        %v466 = vadd.f32 %v464, %v465
        %v467 = vrot.slane %v466, 1
        %v468 = vadd.f32 %v466, %v467
        %s469 = vtos %v468
        %v470 = vstv %s469
        %v471 = vadd.f32 %v397, %v470
        %472 = vst.msk [vmem:[#allocation4] sm:$0x1] %vm351, %v471
        %v473 = vld [vmem:[#allocation5] sm:$0x1]
        %v474 = vmul.f32 %v276, %v276
        %v475 = vmul.f32 %v277, %v277
        %v476 = vmul.f32 %v278, %v278
        %v477 = vmul.f32 %v279, %v279
        %v478 = vmul.f32 %v280, %v280
        %v479 = vmul.f32 %v281, %v281
        %v480 = vmul.f32 %v282, %v282
        %v481 = vmul.f32 %v283, %v283
        %v482 = vmul.f32 %v284, %v284
        %v483 = vmul.f32 %v285, %v285
        %v484 = vmul.f32 %v286, %v286
        %v485 = vmul.f32 %v287, %v287
        %v486 = vmul.f32 %v288, %v288
        %v487 = vmul.f32 %v289, %v289
        %v488 = vmul.f32 %v290, %v290
        %v489 = vmul.f32 %v291, %v291
        %v490 = vmul.f32 %v292, %v292
        %v491 = vmul.f32 %v293, %v293
        %v492 = vmul.f32 %v294, %v294
        %v493 = vmul.f32 %v295, %v295
        %v494 = vmul.f32 %v296, %v296
        %v495 = vmul.f32 %v297, %v297
        %v496 = vmul.f32 %v298, %v298
        %v497 = vmul.f32 %v299, %v299
        %v498 = vmul.f32 %v300, %v300
        %v499 = vmul.f32 %v301, %v301
        %v500 = vmul.f32 %v302, %v302
        %v501 = vmul.f32 %v303, %v303
        %v502 = vmul.f32 %v304, %v304
        %v503 = vmul.f32 %v305, %v305
        %v504 = vmul.f32 %v306, %v306
        %v505 = vmul.f32 %v307, %v307
        %v506 = vadd.f32 %v474, %v475
        %v507 = vadd.f32 %v506, %v476
        %v508 = vadd.f32 %v507, %v477
        %v509 = vadd.f32 %v508, %v478
        %v510 = vadd.f32 %v509, %v479
        %v511 = vadd.f32 %v510, %v480
        %v512 = vadd.f32 %v511, %v481
        %v513 = vadd.f32 %v512, %v482
        %v514 = vadd.f32 %v513, %v483
        %v515 = vadd.f32 %v514, %v484
        %v516 = vadd.f32 %v515, %v485
        %v517 = vadd.f32 %v516, %v486
        %v518 = vadd.f32 %v517, %v487
        %v519 = vadd.f32 %v518, %v488
        %v520 = vadd.f32 %v519, %v489
        %v521 = vadd.f32 %v520, %v490
        %v522 = vadd.f32 %v521, %v491
        %v523 = vadd.f32 %v522, %v492
        %v524 = vadd.f32 %v523, %v493
        %v525 = vadd.f32 %v524, %v494
        %v526 = vadd.f32 %v525, %v495
        %v527 = vadd.f32 %v526, %v496
        %v528 = vadd.f32 %v527, %v497
        %v529 = vadd.f32 %v528, %v498
        %v530 = vadd.f32 %v529, %v499
        %v531 = vadd.f32 %v530, %v500
        %v532 = vadd.f32 %v531, %v501
        %v533 = vadd.f32 %v532, %v502
        %v534 = vadd.f32 %v533, %v503
        %v535 = vadd.f32 %v534, %v504
        %v536 = vadd.f32 %v535, %v505
        %537 = vadd.xlane.f32.xlu0 %v536
        %v538 = vpop.xlane.xlu0 %537
        %v539 = vrot.slane %v538, 4
        %v540 = vadd.f32 %v538, %v539
        %v541 = vrot.slane %v540, 2
        %v542 = vadd.f32 %v540, %v541
        %v543 = vrot.slane %v542, 1
        %v544 = vadd.f32 %v542, %v543
        %s545 = vtos %v544
        %v546 = vstv %s545
        %v547 = vadd.f32 %v473, %v546
        %548 = vst.msk [vmem:[#allocation5] sm:$0x1] %vm351, %v547
        %v549 = vld [vmem:[#allocation6] sm:$0x1]
        %v550 = vmul.f32 %v244, %v276
        %v551 = vmul.f32 %v245, %v277
        %v552 = vmul.f32 %v246, %v278
        %v553 = vmul.f32 %v247, %v279
        %v554 = vmul.f32 %v248, %v280
        %v555 = vmul.f32 %v249, %v281
        %v556 = vmul.f32 %v250, %v282
        %v557 = vmul.f32 %v251, %v283
        %v558 = vmul.f32 %v252, %v284
        %v559 = vmul.f32 %v253, %v285
        %v560 = vmul.f32 %v254, %v286
        %v561 = vmul.f32 %v255, %v287
        %v562 = vmul.f32 %v256, %v288
        %v563 = vmul.f32 %v257, %v289
        %v564 = vmul.f32 %v258, %v290
        %v565 = vmul.f32 %v259, %v291
        %v566 = vmul.f32 %v260, %v292
        %v567 = vmul.f32 %v261, %v293
        %v568 = vmul.f32 %v262, %v294
        %v569 = vmul.f32 %v263, %v295
        %v570 = vmul.f32 %v264, %v296
        %v571 = vmul.f32 %v265, %v297
        %v572 = vmul.f32 %v266, %v298
        %v573 = vmul.f32 %v267, %v299
        %v574 = vmul.f32 %v268, %v300
        %v575 = vmul.f32 %v269, %v301
        %v576 = vmul.f32 %v270, %v302
        %v577 = vmul.f32 %v271, %v303
        %v578 = vmul.f32 %v272, %v304
        %v579 = vmul.f32 %v273, %v305
        %v580 = vmul.f32 %v274, %v306
        %v581 = vmul.f32 %v275, %v307
        %v582 = vadd.f32 %v550, %v551
        %v583 = vadd.f32 %v582, %v552
        %v584 = vadd.f32 %v583, %v553
        %v585 = vadd.f32 %v584, %v554
        %v586 = vadd.f32 %v585, %v555
        %v587 = vadd.f32 %v586, %v556
        %v588 = vadd.f32 %v587, %v557
        %v589 = vadd.f32 %v588, %v558
        %v590 = vadd.f32 %v589, %v559
        %v591 = vadd.f32 %v590, %v560
        %v592 = vadd.f32 %v591, %v561
        %v593 = vadd.f32 %v592, %v562
        %v594 = vadd.f32 %v593, %v563
        %v595 = vadd.f32 %v594, %v564
        %v596 = vadd.f32 %v595, %v565
        %v597 = vadd.f32 %v596, %v566
        %v598 = vadd.f32 %v597, %v567
        %v599 = vadd.f32 %v598, %v568
        %v600 = vadd.f32 %v599, %v569
        %v601 = vadd.f32 %v600, %v570
        %v602 = vadd.f32 %v601, %v571
        %v603 = vadd.f32 %v602, %v572
        %v604 = vadd.f32 %v603, %v573
        %v605 = vadd.f32 %v604, %v574
        %v606 = vadd.f32 %v605, %v575
        %v607 = vadd.f32 %v606, %v576
        %v608 = vadd.f32 %v607, %v577
        %v609 = vadd.f32 %v608, %v578
        %v610 = vadd.f32 %v609, %v579
        %v611 = vadd.f32 %v610, %v580
        %v612 = vadd.f32 %v611, %v581
        %613 = vadd.xlane.f32.xlu0 %v612
        %v614 = vpop.xlane.xlu0 %613
        %v615 = vrot.slane %v614, 4
        %v616 = vadd.f32 %v614, %v615
        %v617 = vrot.slane %v616, 2
        %v618 = vadd.f32 %v616, %v617
        %v619 = vrot.slane %v618, 1
        %v620 = vadd.f32 %v618, %v619
        %s621 = vtos %v620
        %v622 = vstv %s621
        %v623 = vadd.f32 %v549, %v622
        %624 = vst.msk [vmem:[#allocation6] sm:$0x1] %vm351, %v623
        %625 = vmax.xlane.f32.xlu0 %v244
        %v626 = vpop.xlane.xlu0 %625
        %627 = vmax.xlane.f32.xlu0 %v245
        %v628 = vpop.xlane.xlu0 %627
        %629 = vmax.xlane.f32.xlu0 %v246
        %v630 = vpop.xlane.xlu0 %629
        %631 = vmax.xlane.f32.xlu0 %v247
        %v632 = vpop.xlane.xlu0 %631
        %633 = vmax.xlane.f32.xlu0 %v248
        %v634 = vpop.xlane.xlu0 %633
        %635 = vmax.xlane.f32.xlu0 %v249
        %v636 = vpop.xlane.xlu0 %635
        %637 = vmax.xlane.f32.xlu0 %v250
        %v638 = vpop.xlane.xlu0 %637
        %639 = vmax.xlane.f32.xlu0 %v251
        %v640 = vpop.xlane.xlu0 %639
        %641 = vmax.xlane.f32.xlu0 %v252
        %v642 = vpop.xlane.xlu0 %641
        %643 = vmax.xlane.f32.xlu0 %v253
        %v644 = vpop.xlane.xlu0 %643
        %645 = vmax.xlane.f32.xlu0 %v254
        %v646 = vpop.xlane.xlu0 %645
        %647 = vmax.xlane.f32.xlu0 %v255
        %v648 = vpop.xlane.xlu0 %647
        %649 = vmax.xlane.f32.xlu0 %v256
        %v650 = vpop.xlane.xlu0 %649
        %651 = vmax.xlane.f32.xlu0 %v257
        %v652 = vpop.xlane.xlu0 %651
        %653 = vmax.xlane.f32.xlu0 %v258
        %v654 = vpop.xlane.xlu0 %653
        %655 = vmax.xlane.f32.xlu0 %v259
        %v656 = vpop.xlane.xlu0 %655
        %657 = vmax.xlane.f32.xlu0 %v260
        %v658 = vpop.xlane.xlu0 %657
        %659 = vmax.xlane.f32.xlu0 %v261
        %v660 = vpop.xlane.xlu0 %659
        %661 = vmax.xlane.f32.xlu0 %v262
        %v662 = vpop.xlane.xlu0 %661
        %663 = vmax.xlane.f32.xlu0 %v263
        %v664 = vpop.xlane.xlu0 %663
        %665 = vmax.xlane.f32.xlu0 %v264
        %v666 = vpop.xlane.xlu0 %665
        %667 = vmax.xlane.f32.xlu0 %v265
        %v668 = vpop.xlane.xlu0 %667
        %669 = vmax.xlane.f32.xlu0 %v266
        %v670 = vpop.xlane.xlu0 %669
        %671 = vmax.xlane.f32.xlu0 %v267
        %v672 = vpop.xlane.xlu0 %671
        %673 = vmax.xlane.f32.xlu0 %v268
        %v674 = vpop.xlane.xlu0 %673
        %675 = vmax.xlane.f32.xlu0 %v269
        %v676 = vpop.xlane.xlu0 %675
        %677 = vmax.xlane.f32.xlu0 %v270
        %v678 = vpop.xlane.xlu0 %677
        %679 = vmax.xlane.f32.xlu0 %v271
        %v680 = vpop.xlane.xlu0 %679
        %681 = vmax.xlane.f32.xlu0 %v272
        %v682 = vpop.xlane.xlu0 %681
        %683 = vmax.xlane.f32.xlu0 %v273
        %v684 = vpop.xlane.xlu0 %683
        %685 = vmax.xlane.f32.xlu0 %v274
        %v686 = vpop.xlane.xlu0 %685
        %687 = vmax.xlane.f32.xlu0 %v275
        %v688 = vpop.xlane.xlu0 %687
        %v689 = vsub.f32 %v244, %v626
        %v690 = vsub.f32 %v245, %v628
        %v691 = vsub.f32 %v246, %v630
        %v692 = vsub.f32 %v247, %v632
        %v693 = vsub.f32 %v248, %v634
        %v694 = vsub.f32 %v249, %v636
        %v695 = vsub.f32 %v250, %v638
        %v696 = vsub.f32 %v251, %v640
        %v697 = vsub.f32 %v252, %v642
        %v698 = vsub.f32 %v253, %v644
        %v699 = vsub.f32 %v254, %v646
        %v700 = vsub.f32 %v255, %v648
        %v701 = vsub.f32 %v256, %v650
        %v702 = vsub.f32 %v257, %v652
        %v703 = vsub.f32 %v258, %v654
        %v704 = vsub.f32 %v259, %v656
        %v705 = vsub.f32 %v260, %v658
        %v706 = vsub.f32 %v261, %v660
        %v707 = vsub.f32 %v262, %v662
        %v708 = vsub.f32 %v263, %v664
        %v709 = vsub.f32 %v264, %v666
        %v710 = vsub.f32 %v265, %v668
        %v711 = vsub.f32 %v266, %v670
        %v712 = vsub.f32 %v267, %v672
        %v713 = vsub.f32 %v268, %v674
        %v714 = vsub.f32 %v269, %v676
        %v715 = vsub.f32 %v270, %v678
        %v716 = vsub.f32 %v271, %v680
        %v717 = vsub.f32 %v272, %v682
        %v718 = vsub.f32 %v273, %v684
        %v719 = vsub.f32 %v274, %v686
        %v720 = vsub.f32 %v275, %v688
        %v721 = vmul.f32 %v689, 1.442695
        %v722 = vpow.pop %v721
        %v723 = vmul.f32 %v690, 1.442695
        %v724 = vpow.pop %v723
        %v725 = vmul.f32 %v691, 1.442695
        %v726 = vpow.pop %v725
        %v727 = vmul.f32 %v692, 1.442695
        %v728 = vpow.pop %v727
        %v729 = vmul.f32 %v693, 1.442695
        %v730 = vpow.pop %v729
        %v731 = vmul.f32 %v694, 1.442695
        %v732 = vpow.pop %v731
        %v733 = vmul.f32 %v695, 1.442695
        %v734 = vpow.pop %v733
        %v735 = vmul.f32 %v696, 1.442695
        %v736 = vpow.pop %v735
        %v737 = vmul.f32 %v697, 1.442695
        %v738 = vpow.pop %v737
        %v739 = vmul.f32 %v698, 1.442695
        %v740 = vpow.pop %v739
        %v741 = vmul.f32 %v699, 1.442695
        %v742 = vpow.pop %v741
        %v743 = vmul.f32 %v700, 1.442695
        %v744 = vpow.pop %v743
        %v745 = vmul.f32 %v701, 1.442695
        %v746 = vpow.pop %v745
        %v747 = vmul.f32 %v702, 1.442695
        %v748 = vpow.pop %v747
        %v749 = vmul.f32 %v703, 1.442695
        %v750 = vpow.pop %v749
        %v751 = vmul.f32 %v704, 1.442695
        %v752 = vpow.pop %v751
        %v753 = vmul.f32 %v705, 1.442695
        %v754 = vpow.pop %v753
        %v755 = vmul.f32 %v706, 1.442695
        %v756 = vpow.pop %v755
        %v757 = vmul.f32 %v707, 1.442695
        %v758 = vpow.pop %v757
        %v759 = vmul.f32 %v708, 1.442695
        %v760 = vpow.pop %v759
        %v761 = vmul.f32 %v709, 1.442695
        %v762 = vpow.pop %v761
        %v763 = vmul.f32 %v710, 1.442695
        %v764 = vpow.pop %v763
        %v765 = vmul.f32 %v711, 1.442695
        %v766 = vpow.pop %v765
        %v767 = vmul.f32 %v712, 1.442695
        %v768 = vpow.pop %v767
        %v769 = vmul.f32 %v713, 1.442695
        %v770 = vpow.pop %v769
        %v771 = vmul.f32 %v714, 1.442695
        %v772 = vpow.pop %v771
        %v773 = vmul.f32 %v715, 1.442695
        %v774 = vpow.pop %v773
        %v775 = vmul.f32 %v716, 1.442695
        %v776 = vpow.pop %v775
        %v777 = vmul.f32 %v717, 1.442695
        %v778 = vpow.pop %v777
        %v779 = vmul.f32 %v718, 1.442695
        %v780 = vpow.pop %v779
        %v781 = vmul.f32 %v719, 1.442695
        %v782 = vpow.pop %v781
        %v783 = vmul.f32 %v720, 1.442695
        %v784 = vpow.pop %v783
        %785 = vadd.xlane.f32.xlu0 %v722
        %v786 = vpop.xlane.xlu0 %785
        %787 = vadd.xlane.f32.xlu0 %v724
        %v788 = vpop.xlane.xlu0 %787
        %789 = vadd.xlane.f32.xlu0 %v726
        %v790 = vpop.xlane.xlu0 %789
        %791 = vadd.xlane.f32.xlu0 %v728
        %v792 = vpop.xlane.xlu0 %791
        %793 = vadd.xlane.f32.xlu0 %v730
        %v794 = vpop.xlane.xlu0 %793
        %795 = vadd.xlane.f32.xlu0 %v732
        %v796 = vpop.xlane.xlu0 %795
        %797 = vadd.xlane.f32.xlu0 %v734
        %v798 = vpop.xlane.xlu0 %797
        %799 = vadd.xlane.f32.xlu0 %v736
        %v800 = vpop.xlane.xlu0 %799
        %801 = vadd.xlane.f32.xlu0 %v738
        %v802 = vpop.xlane.xlu0 %801
        %803 = vadd.xlane.f32.xlu0 %v740
        %v804 = vpop.xlane.xlu0 %803
        %805 = vadd.xlane.f32.xlu0 %v742
        %v806 = vpop.xlane.xlu0 %805
        %807 = vadd.xlane.f32.xlu0 %v744
        %v808 = vpop.xlane.xlu0 %807
        %809 = vadd.xlane.f32.xlu0 %v746
        %v810 = vpop.xlane.xlu0 %809
        %811 = vadd.xlane.f32.xlu0 %v748
        %v812 = vpop.xlane.xlu0 %811
        %813 = vadd.xlane.f32.xlu0 %v750
        %v814 = vpop.xlane.xlu0 %813
        %815 = vadd.xlane.f32.xlu0 %v752
        %v816 = vpop.xlane.xlu0 %815
        %817 = vadd.xlane.f32.xlu0 %v754
        %v818 = vpop.xlane.xlu0 %817
        %819 = vadd.xlane.f32.xlu0 %v756
        %v820 = vpop.xlane.xlu0 %819
        %821 = vadd.xlane.f32.xlu0 %v758
        %v822 = vpop.xlane.xlu0 %821
        %823 = vadd.xlane.f32.xlu0 %v760
        %v824 = vpop.xlane.xlu0 %823
        %825 = vadd.xlane.f32.xlu0 %v762
        %v826 = vpop.xlane.xlu0 %825
        %827 = vadd.xlane.f32.xlu0 %v764
        %v828 = vpop.xlane.xlu0 %827
        %829 = vadd.xlane.f32.xlu0 %v766
        %v830 = vpop.xlane.xlu0 %829
        %831 = vadd.xlane.f32.xlu0 %v768
        %v832 = vpop.xlane.xlu0 %831
        %833 = vadd.xlane.f32.xlu0 %v770
        %v834 = vpop.xlane.xlu0 %833
        %835 = vadd.xlane.f32.xlu0 %v772
        %v836 = vpop.xlane.xlu0 %835
        %837 = vadd.xlane.f32.xlu0 %v774
        %v838 = vpop.xlane.xlu0 %837
        %839 = vadd.xlane.f32.xlu0 %v776
        %v840 = vpop.xlane.xlu0 %839
        %841 = vadd.xlane.f32.xlu0 %v778
        %v842 = vpop.xlane.xlu0 %841
        %843 = vadd.xlane.f32.xlu0 %v780
        %v844 = vpop.xlane.xlu0 %843
        %845 = vadd.xlane.f32.xlu0 %v782
        %v846 = vpop.xlane.xlu0 %845
        %847 = vadd.xlane.f32.xlu0 %v784
        %v848 = vpop.xlane.xlu0 %847
        %v849 = vrcp.pop %v786
        %v850 = vrcp.pop %v788
        %v851 = vrcp.pop %v790
        %v852 = vrcp.pop %v792
        %v853 = vrcp.pop %v794
        %v854 = vrcp.pop %v796
        %v855 = vrcp.pop %v798
        %v856 = vrcp.pop %v800
        %v857 = vrcp.pop %v802
        %v858 = vrcp.pop %v804
        %v859 = vrcp.pop %v806
        %v860 = vrcp.pop %v808
        %v861 = vrcp.pop %v810
        %v862 = vrcp.pop %v812
        %v863 = vrcp.pop %v814
        %v864 = vrcp.pop %v816
        %v865 = vrcp.pop %v818
        %v866 = vrcp.pop %v820
        %v867 = vrcp.pop %v822
        %v868 = vrcp.pop %v824
        %v869 = vrcp.pop %v826
        %v870 = vrcp.pop %v828
        %v871 = vrcp.pop %v830
        %v872 = vrcp.pop %v832
        %v873 = vrcp.pop %v834
        %v874 = vrcp.pop %v836
        %v875 = vrcp.pop %v838
        %v876 = vrcp.pop %v840
        %v877 = vrcp.pop %v842
        %v878 = vrcp.pop %v844
        %v879 = vrcp.pop %v846
        %v880 = vrcp.pop %v848
        %v881 = vmul.f32 %v722, %v849
        %v882 = vmul.f32 %v724, %v850
        %v883 = vmul.f32 %v726, %v851
        %v884 = vmul.f32 %v728, %v852
        %v885 = vmul.f32 %v730, %v853
        %v886 = vmul.f32 %v732, %v854
        %v887 = vmul.f32 %v734, %v855
        %v888 = vmul.f32 %v736, %v856
        %v889 = vmul.f32 %v738, %v857
        %v890 = vmul.f32 %v740, %v858
        %v891 = vmul.f32 %v742, %v859
        %v892 = vmul.f32 %v744, %v860
        %v893 = vmul.f32 %v746, %v861
        %v894 = vmul.f32 %v748, %v862
        %v895 = vmul.f32 %v750, %v863
        %v896 = vmul.f32 %v752, %v864
        %v897 = vmul.f32 %v754, %v865
        %v898 = vmul.f32 %v756, %v866
        %v899 = vmul.f32 %v758, %v867
        %v900 = vmul.f32 %v760, %v868
        %v901 = vmul.f32 %v762, %v869
        %v902 = vmul.f32 %v764, %v870
        %v903 = vmul.f32 %v766, %v871
        %v904 = vmul.f32 %v768, %v872
        %v905 = vmul.f32 %v770, %v873
        %v906 = vmul.f32 %v772, %v874
        %v907 = vmul.f32 %v774, %v875
        %v908 = vmul.f32 %v776, %v876
        %v909 = vmul.f32 %v778, %v877
        %v910 = vmul.f32 %v780, %v878
        %v911 = vmul.f32 %v782, %v879
        %v912 = vmul.f32 %v784, %v880
        %v913 = vsub.f32 %v881, %v276
        %v914 = vsub.f32 %v882, %v277
        %v915 = vsub.f32 %v883, %v278
        %v916 = vsub.f32 %v884, %v279
        %v917 = vsub.f32 %v885, %v280
        %v918 = vsub.f32 %v886, %v281
        %v919 = vsub.f32 %v887, %v282
        %v920 = vsub.f32 %v888, %v283
        %v921 = vsub.f32 %v889, %v284
        %v922 = vsub.f32 %v890, %v285
        %v923 = vsub.f32 %v891, %v286
        %v924 = vsub.f32 %v892, %v287
        %v925 = vsub.f32 %v893, %v288
        %v926 = vsub.f32 %v894, %v289
        %v927 = vsub.f32 %v895, %v290
        %v928 = vsub.f32 %v896, %v291
        %v929 = vsub.f32 %v897, %v292
        %v930 = vsub.f32 %v898, %v293
        %v931 = vsub.f32 %v899, %v294
        %v932 = vsub.f32 %v900, %v295
        %v933 = vsub.f32 %v901, %v296
        %v934 = vsub.f32 %v902, %v297
        %v935 = vsub.f32 %v903, %v298
        %v936 = vsub.f32 %v904, %v299
        %v937 = vsub.f32 %v905, %v300
        %v938 = vsub.f32 %v906, %v301
        %v939 = vsub.f32 %v907, %v302
        %v940 = vsub.f32 %v908, %v303
        %v941 = vsub.f32 %v909, %v304
        %v942 = vsub.f32 %v910, %v305
        %v943 = vsub.f32 %v911, %v306
        %v944 = vsub.f32 %v912, %v307
        %v945 = vld [vmem:[#allocation13] sm:$0xff]
        %v946 = vld [vmem:[#allocation13 + $0x8] sm:$0xff]
        %v947 = vld [vmem:[#allocation13 + $0x10] sm:$0xff]
        %v948 = vld [vmem:[#allocation13 + $0x18] sm:$0xff]
        %v949 = vld [vmem:[#allocation13 + $0x20] sm:$0xff]
        %v950 = vld [vmem:[#allocation13 + $0x28] sm:$0xff]
        %v951 = vld [vmem:[#allocation13 + $0x30] sm:$0xff]
        %v952 = vld [vmem:[#allocation13 + $0x38] sm:$0xff]
        %v953 = vld [vmem:[#allocation13 + $0x40] sm:$0xff]
        %v954 = vld [vmem:[#allocation13 + $0x48] sm:$0xff]
        %v955 = vld [vmem:[#allocation13 + $0x50] sm:$0xff]
        %v956 = vld [vmem:[#allocation13 + $0x58] sm:$0xff]
        %v957 = vld [vmem:[#allocation13 + $0x60] sm:$0xff]
        %v958 = vld [vmem:[#allocation13 + $0x68] sm:$0xff]
        %v959 = vld [vmem:[#allocation13 + $0x70] sm:$0xff]
        %v960 = vld [vmem:[#allocation13 + $0x78] sm:$0xff]
        %961 = vmatprep.subr.mxu0 0.0
        %962 = vmatpush1.msra.mxu0 %v960
        %963 = vmatprep.subr.mxu0 0.0
        %964 = vmatpush1.msra.mxu0 %v959
        %965 = vmatprep.subr.mxu0 0.0
        %966 = vmatpush1.msra.mxu0 %v958
        %967 = vmatprep.subr.mxu0 0.0
        %968 = vmatpush1.msra.mxu0 %v957
        %969 = vmatprep.subr.mxu0 0.0
        %970 = vmatpush1.msra.mxu0 %v956
        %971 = vmatprep.subr.mxu0 0.0
        %972 = vmatpush1.msra.mxu0 %v955
        %973 = vmatprep.subr.mxu0 0.0
        %974 = vmatpush1.msra.mxu0 %v954
        %975 = vmatprep.subr.mxu0 0.0
        %976 = vmatpush1.msra.mxu0 %v953
        %977 = vmatprep.subr.mxu0 0.0
        %978 = vmatpush1.msra.mxu0 %v952
        %979 = vmatprep.subr.mxu0 0.0
        %980 = vmatpush1.msra.mxu0 %v951
        %981 = vmatprep.subr.mxu0 0.0
        %982 = vmatpush1.msra.mxu0 %v950
        %983 = vmatprep.subr.mxu0 0.0
        %984 = vmatpush1.msra.mxu0 %v949
        %985 = vmatprep.subr.mxu0 0.0
        %986 = vmatpush1.msra.mxu0 %v948
        %987 = vmatprep.subr.mxu0 0.0
        %988 = vmatpush1.msra.mxu0 %v947
        %989 = vmatprep.subr.mxu0 0.0
        %990 = vmatpush1.msra.mxu0 %v946
        %991 = vmatprep.subr.mxu0 0.0
        %992 = vmatpush1.msra.mxu0 %v945
        %993 = vmatprep.subr.mxu0 0.0
        %994 = vmatpush2.msra.mxu0 0.0
        %995 = vmatprep.subr.mxu0 0.0
        %996 = vmatpush2.msra.mxu0 0.0
        %997 = vmatprep.subr.mxu0 0.0
        %998 = vmatpush2.msra.mxu0 0.0
        %999 = vmatprep.subr.mxu0 0.0
        %1000 = vmatpush2.msra.mxu0 0.0
        %1001 = vmatprep.subr.mxu0 0.0
        %1002 = vmatpush2.msra.mxu0 0.0
        %1003 = vmatprep.subr.mxu0 0.0
        %1004 = vmatpush2.msra.mxu0 0.0
        %1005 = vmatprep.subr.mxu0 0.0
        %1006 = vmatpush2.msra.mxu0 0.0
        %1007 = vmatprep.subr.mxu0 0.0
        %1008 = vmatpush2.msra.mxu0 0.0
        %1009 = vmatprep.subr.mxu0 0.0
        %1010 = vmatpush2.msra.mxu0 0.0
        %1011 = vmatprep.subr.mxu0 0.0
        %1012 = vmatpush2.msra.mxu0 0.0
        %1013 = vmatprep.subr.mxu0 0.0
        %1014 = vmatpush2.msra.mxu0 0.0
        %1015 = vmatprep.subr.mxu0 0.0
        %1016 = vmatpush2.msra.mxu0 0.0
        %1017 = vmatprep.subr.mxu0 0.0
        %1018 = vmatpush2.msra.mxu0 0.0
        %1019 = vmatprep.subr.mxu0 0.0
        %1020 = vmatpush2.msra.mxu0 0.0
        %1021 = vmatprep.subr.mxu0 0.0
        %1022 = vmatpush2.msra.mxu0 0.0
        %1023 = vmatprep.subr.mxu0 0.0
        %1024 = vmatpush2.msra.mxu0 0.0
        %1025 = vmatprep.mubr.f32.mxu0 0.0
        %1026 = vmatmul.mubr.f32.gmra.mxu0 %v913
        %v1027 = vpop.f32.mrf.mxu0
        %v1028 = vadd.f32 0.0, %v1027
        %v1029 = vpop.f32.mrf.mxu0
        %1030 = vmatprep.mubr.f32.mxu0 0.0
        %1031 = vmatmul.mubr.f32.gmra.mxu0 %v914
        %v1032 = vpop.f32.mrf.mxu0
        %v1033 = vadd.f32 0.0, %v1032
        %v1034 = vpop.f32.mrf.mxu0
        %1035 = vmatprep.mubr.f32.mxu0 0.0
        %1036 = vmatmul.mubr.f32.gmra.mxu0 %v915
        %v1037 = vpop.f32.mrf.mxu0
        %v1038 = vadd.f32 0.0, %v1037
        %v1039 = vpop.f32.mrf.mxu0
        %1040 = vmatprep.mubr.f32.mxu0 0.0
        %1041 = vmatmul.mubr.f32.gmra.mxu0 %v916
        %v1042 = vpop.f32.mrf.mxu0
        %v1043 = vadd.f32 0.0, %v1042
        %v1044 = vpop.f32.mrf.mxu0
        %1045 = vmatprep.mubr.f32.mxu0 0.0
        %1046 = vmatmul.mubr.f32.gmra.mxu0 %v917
        %v1047 = vpop.f32.mrf.mxu0
        %v1048 = vadd.f32 0.0, %v1047
        %v1049 = vpop.f32.mrf.mxu0
        %1050 = vmatprep.mubr.f32.mxu0 0.0
        %1051 = vmatmul.mubr.f32.gmra.mxu0 %v918
        %v1052 = vpop.f32.mrf.mxu0
        %v1053 = vadd.f32 0.0, %v1052
        %v1054 = vpop.f32.mrf.mxu0
        %1055 = vmatprep.mubr.f32.mxu0 0.0
        %1056 = vmatmul.mubr.f32.gmra.mxu0 %v919
        %v1057 = vpop.f32.mrf.mxu0
        %v1058 = vadd.f32 0.0, %v1057
        %v1059 = vpop.f32.mrf.mxu0
        %1060 = vmatprep.mubr.f32.mxu0 0.0
        %1061 = vmatmul.mubr.f32.gmra.mxu0 %v920
        %v1062 = vpop.f32.mrf.mxu0
        %v1063 = vadd.f32 0.0, %v1062
        %v1064 = vpop.f32.mrf.mxu0
        %1065 = vmatprep.mubr.f32.mxu0 0.0
        %1066 = vmatmul.mubr.f32.gmra.mxu0 %v921
        %v1067 = vpop.f32.mrf.mxu0
        %v1068 = vadd.f32 0.0, %v1067
        %v1069 = vpop.f32.mrf.mxu0
        %1070 = vmatprep.mubr.f32.mxu0 0.0
        %1071 = vmatmul.mubr.f32.gmra.mxu0 %v922
        %v1072 = vpop.f32.mrf.mxu0
        %v1073 = vadd.f32 0.0, %v1072
        %v1074 = vpop.f32.mrf.mxu0
        %1075 = vmatprep.mubr.f32.mxu0 0.0
        %1076 = vmatmul.mubr.f32.gmra.mxu0 %v923
        %v1077 = vpop.f32.mrf.mxu0
        %v1078 = vadd.f32 0.0, %v1077
        %v1079 = vpop.f32.mrf.mxu0
        %1080 = vmatprep.mubr.f32.mxu0 0.0
        %1081 = vmatmul.mubr.f32.gmra.mxu0 %v924
        %v1082 = vpop.f32.mrf.mxu0
        %v1083 = vadd.f32 0.0, %v1082
        %v1084 = vpop.f32.mrf.mxu0
        %1085 = vmatprep.mubr.f32.mxu0 0.0
        %1086 = vmatmul.mubr.f32.gmra.mxu0 %v925
        %v1087 = vpop.f32.mrf.mxu0
        %v1088 = vadd.f32 0.0, %v1087
        %v1089 = vpop.f32.mrf.mxu0
        %1090 = vmatprep.mubr.f32.mxu0 0.0
        %1091 = vmatmul.mubr.f32.gmra.mxu0 %v926
        %v1092 = vpop.f32.mrf.mxu0
        %v1093 = vadd.f32 0.0, %v1092
        %v1094 = vpop.f32.mrf.mxu0
        %1095 = vmatprep.mubr.f32.mxu0 0.0
        %1096 = vmatmul.mubr.f32.gmra.mxu0 %v927
        %v1097 = vpop.f32.mrf.mxu0
        %v1098 = vadd.f32 0.0, %v1097
        %v1099 = vpop.f32.mrf.mxu0
        %1100 = vmatprep.mubr.f32.mxu0 0.0
        %1101 = vmatmul.mubr.f32.gmra.mxu0 %v928
        %v1102 = vpop.f32.mrf.mxu0
        %v1103 = vadd.f32 0.0, %v1102
        %v1104 = vpop.f32.mrf.mxu0
        %1105 = vmatprep.mubr.f32.mxu0 0.0
        %1106 = vmatmul.mubr.f32.gmra.mxu0 %v929
        %v1107 = vpop.f32.mrf.mxu0
        %v1108 = vadd.f32 0.0, %v1107
        %v1109 = vpop.f32.mrf.mxu0
        %1110 = vmatprep.mubr.f32.mxu0 0.0
        %1111 = vmatmul.mubr.f32.gmra.mxu0 %v930
        %v1112 = vpop.f32.mrf.mxu0
        %v1113 = vadd.f32 0.0, %v1112
        %v1114 = vpop.f32.mrf.mxu0
        %1115 = vmatprep.mubr.f32.mxu0 0.0
        %1116 = vmatmul.mubr.f32.gmra.mxu0 %v931
        %v1117 = vpop.f32.mrf.mxu0
        %v1118 = vadd.f32 0.0, %v1117
        %v1119 = vpop.f32.mrf.mxu0
        %1120 = vmatprep.mubr.f32.mxu0 0.0
        %1121 = vmatmul.mubr.f32.gmra.mxu0 %v932
        %v1122 = vpop.f32.mrf.mxu0
        %v1123 = vadd.f32 0.0, %v1122
        %v1124 = vpop.f32.mrf.mxu0
        %1125 = vmatprep.mubr.f32.mxu0 0.0
        %1126 = vmatmul.mubr.f32.gmra.mxu0 %v933
        %v1127 = vpop.f32.mrf.mxu0
        %v1128 = vadd.f32 0.0, %v1127
        %v1129 = vpop.f32.mrf.mxu0
        %1130 = vmatprep.mubr.f32.mxu0 0.0
        %1131 = vmatmul.mubr.f32.gmra.mxu0 %v934
        %v1132 = vpop.f32.mrf.mxu0
        %v1133 = vadd.f32 0.0, %v1132
        %v1134 = vpop.f32.mrf.mxu0
        %1135 = vmatprep.mubr.f32.mxu0 0.0
        %1136 = vmatmul.mubr.f32.gmra.mxu0 %v935
        %v1137 = vpop.f32.mrf.mxu0
        %v1138 = vadd.f32 0.0, %v1137
        %v1139 = vpop.f32.mrf.mxu0
        %1140 = vmatprep.mubr.f32.mxu0 0.0
        %1141 = vmatmul.mubr.f32.gmra.mxu0 %v936
        %v1142 = vpop.f32.mrf.mxu0
        %v1143 = vadd.f32 0.0, %v1142
        %v1144 = vpop.f32.mrf.mxu0
        %1145 = vmatprep.mubr.f32.mxu0 0.0
        %1146 = vmatmul.mubr.f32.gmra.mxu0 %v937
        %v1147 = vpop.f32.mrf.mxu0
        %v1148 = vadd.f32 0.0, %v1147
        %v1149 = vpop.f32.mrf.mxu0
        %1150 = vmatprep.mubr.f32.mxu0 0.0
        %1151 = vmatmul.mubr.f32.gmra.mxu0 %v938
        %v1152 = vpop.f32.mrf.mxu0
        %v1153 = vadd.f32 0.0, %v1152
        %v1154 = vpop.f32.mrf.mxu0
        %1155 = vmatprep.mubr.f32.mxu0 0.0
        %1156 = vmatmul.mubr.f32.gmra.mxu0 %v939
        %v1157 = vpop.f32.mrf.mxu0
        %v1158 = vadd.f32 0.0, %v1157
        %v1159 = vpop.f32.mrf.mxu0
        %1160 = vmatprep.mubr.f32.mxu0 0.0
        %1161 = vmatmul.mubr.f32.gmra.mxu0 %v940
        %v1162 = vpop.f32.mrf.mxu0
        %v1163 = vadd.f32 0.0, %v1162
        %v1164 = vpop.f32.mrf.mxu0
        %1165 = vmatprep.mubr.f32.mxu0 0.0
        %1166 = vmatmul.mubr.f32.gmra.mxu0 %v941
        %v1167 = vpop.f32.mrf.mxu0
        %v1168 = vadd.f32 0.0, %v1167
        %v1169 = vpop.f32.mrf.mxu0
        %1170 = vmatprep.mubr.f32.mxu0 0.0
        %1171 = vmatmul.mubr.f32.gmra.mxu0 %v942
        %v1172 = vpop.f32.mrf.mxu0
        %v1173 = vadd.f32 0.0, %v1172
        %v1174 = vpop.f32.mrf.mxu0
        %1175 = vmatprep.mubr.f32.mxu0 0.0
        %1176 = vmatmul.mubr.f32.gmra.mxu0 %v943
        %v1177 = vpop.f32.mrf.mxu0
        %v1178 = vadd.f32 0.0, %v1177
        %v1179 = vpop.f32.mrf.mxu0
        %1180 = vmatprep.mubr.f32.mxu0 0.0
        %1181 = vmatmul.mubr.f32.gmra.mxu0 %v944
        %v1182 = vpop.f32.mrf.mxu0
        %v1183 = vadd.f32 0.0, %v1182
        %v1184 = vpop.f32.mrf.mxu0
        %1185 = vdwg.mxu0
        %v1186 = vand.u32 2147483647, %v1028
        %v1187 = vand.u32 2147483647, %v1033
        %v1188 = vand.u32 2147483647, %v1038
        %v1189 = vand.u32 2147483647, %v1043
        %v1190 = vand.u32 2147483647, %v1048
        %v1191 = vand.u32 2147483647, %v1053
        %v1192 = vand.u32 2147483647, %v1058
        %v1193 = vand.u32 2147483647, %v1063
        %v1194 = vand.u32 2147483647, %v1068
        %v1195 = vand.u32 2147483647, %v1073
        %v1196 = vand.u32 2147483647, %v1078
        %v1197 = vand.u32 2147483647, %v1083
        %v1198 = vand.u32 2147483647, %v1088
        %v1199 = vand.u32 2147483647, %v1093
        %v1200 = vand.u32 2147483647, %v1098
        %v1201 = vand.u32 2147483647, %v1103
        %v1202 = vand.u32 2147483647, %v1108
        %v1203 = vand.u32 2147483647, %v1113
        %v1204 = vand.u32 2147483647, %v1118
        %v1205 = vand.u32 2147483647, %v1123
        %v1206 = vand.u32 2147483647, %v1128
        %v1207 = vand.u32 2147483647, %v1133
        %v1208 = vand.u32 2147483647, %v1138
        %v1209 = vand.u32 2147483647, %v1143
        %v1210 = vand.u32 2147483647, %v1148
        %v1211 = vand.u32 2147483647, %v1153
        %v1212 = vand.u32 2147483647, %v1158
        %v1213 = vand.u32 2147483647, %v1163
        %v1214 = vand.u32 2147483647, %v1168
        %v1215 = vand.u32 2147483647, %v1173
        %v1216 = vand.u32 2147483647, %v1178
        %v1217 = vand.u32 2147483647, %v1183
        %v1218 = vlaneseq
        %v1219 = vshrl.u32 %v1218, 7
        %v1220 = vadd.s32 %v1219, 8
        %v1221 = vadd.s32 %v1219, 16
        %v1222 = vadd.s32 %v1219, 24
        %v1223 = vadd.s32 %v1219, 32
        %v1224 = vadd.s32 %v1219, 40
        %v1225 = vadd.s32 %v1219, 48
        %v1226 = vadd.s32 %v1219, 56
        %v1227 = vadd.s32 %v1219, 64
        %v1228 = vadd.s32 %v1219, 72
        %v1229 = vadd.s32 %v1219, 80
        %v1230 = vadd.s32 %v1219, 88
        %v1231 = vadd.s32 %v1219, 96
        %v1232 = vadd.s32 %v1219, 104
        %v1233 = vadd.s32 %v1219, 112
        %v1234 = vadd.s32 %v1219, 120
        %v1235 = vadd.s32 %v1219, 128
        %v1236 = vadd.s32 %v1219, 136
        %v1237 = vadd.s32 %v1219, 144
        %v1238 = vadd.s32 %v1219, 152
        %v1239 = vadd.s32 %v1219, 160
        %v1240 = vadd.s32 %v1219, 168
        %v1241 = vadd.s32 %v1219, 176
        %v1242 = vadd.s32 %v1219, 184
        %v1243 = vadd.s32 %v1219, 192
        %v1244 = vadd.s32 %v1219, 200
        %v1245 = vadd.s32 %v1219, 208
        %v1246 = vadd.s32 %v1219, 216
        %v1247 = vadd.s32 %v1219, 224
        %v1248 = vadd.s32 %v1219, 232
        %v1249 = vadd.s32 %v1219, 240
        %v1250 = vadd.s32 %v1219, 248
        %s1251 = smul.u32 %s21, 256
        %v1252 = vstv %s1251
        %v1253 = vadd.s32 %v1219, %v1252
        %v1254 = vadd.s32 %v1220, %v1252
        %v1255 = vadd.s32 %v1221, %v1252
        %v1256 = vadd.s32 %v1222, %v1252
        %v1257 = vadd.s32 %v1223, %v1252
        %v1258 = vadd.s32 %v1224, %v1252
        %v1259 = vadd.s32 %v1225, %v1252
        %v1260 = vadd.s32 %v1226, %v1252
        %v1261 = vadd.s32 %v1227, %v1252
        %v1262 = vadd.s32 %v1228, %v1252
        %v1263 = vadd.s32 %v1229, %v1252
        %v1264 = vadd.s32 %v1230, %v1252
        %v1265 = vadd.s32 %v1231, %v1252
        %v1266 = vadd.s32 %v1232, %v1252
        %v1267 = vadd.s32 %v1233, %v1252
        %v1268 = vadd.s32 %v1234, %v1252
        %v1269 = vadd.s32 %v1235, %v1252
        %v1270 = vadd.s32 %v1236, %v1252
        %v1271 = vadd.s32 %v1237, %v1252
        %v1272 = vadd.s32 %v1238, %v1252
        %v1273 = vadd.s32 %v1239, %v1252
        %v1274 = vadd.s32 %v1240, %v1252
        %v1275 = vadd.s32 %v1241, %v1252
        %v1276 = vadd.s32 %v1242, %v1252
        %v1277 = vadd.s32 %v1243, %v1252
        %v1278 = vadd.s32 %v1244, %v1252
        %v1279 = vadd.s32 %v1245, %v1252
        %v1280 = vadd.s32 %v1246, %v1252
        %v1281 = vadd.s32 %v1247, %v1252
        %v1282 = vadd.s32 %v1248, %v1252
        %v1283 = vadd.s32 %v1249, %v1252
        %v1284 = vadd.s32 %v1250, %v1252
        %vm1285 = vcmp.lt.s32.totalorder %v1253, 384
        %vm1286 = vcmp.lt.s32.totalorder %v1254, 384
        %vm1287 = vcmp.lt.s32.totalorder %v1255, 384
        %vm1288 = vcmp.lt.s32.totalorder %v1256, 384
        %vm1289 = vcmp.lt.s32.totalorder %v1257, 384
        %vm1290 = vcmp.lt.s32.totalorder %v1258, 384
        %vm1291 = vcmp.lt.s32.totalorder %v1259, 384
        %vm1292 = vcmp.lt.s32.totalorder %v1260, 384
        %vm1293 = vcmp.lt.s32.totalorder %v1261, 384
        %vm1294 = vcmp.lt.s32.totalorder %v1262, 384
        %vm1295 = vcmp.lt.s32.totalorder %v1263, 384
        %vm1296 = vcmp.lt.s32.totalorder %v1264, 384
        %vm1297 = vcmp.lt.s32.totalorder %v1265, 384
        %vm1298 = vcmp.lt.s32.totalorder %v1266, 384
        %vm1299 = vcmp.lt.s32.totalorder %v1267, 384
        %vm1300 = vcmp.lt.s32.totalorder %v1268, 384
        %vm1301 = vcmp.lt.s32.totalorder %v1269, 384
        %vm1302 = vcmp.lt.s32.totalorder %v1270, 384
        %vm1303 = vcmp.lt.s32.totalorder %v1271, 384
        %vm1304 = vcmp.lt.s32.totalorder %v1272, 384
        %vm1305 = vcmp.lt.s32.totalorder %v1273, 384
        %vm1306 = vcmp.lt.s32.totalorder %v1274, 384
        %vm1307 = vcmp.lt.s32.totalorder %v1275, 384
        %vm1308 = vcmp.lt.s32.totalorder %v1276, 384
        %vm1309 = vcmp.lt.s32.totalorder %v1277, 384
        %vm1310 = vcmp.lt.s32.totalorder %v1278, 384
        %vm1311 = vcmp.lt.s32.totalorder %v1279, 384
        %vm1312 = vcmp.lt.s32.totalorder %v1280, 384
        %vm1313 = vcmp.lt.s32.totalorder %v1281, 384
        %vm1314 = vcmp.lt.s32.totalorder %v1282, 384
        %vm1315 = vcmp.lt.s32.totalorder %v1283, 384
        %vm1316 = vcmp.lt.s32.totalorder %v1284, 384
        %v1317 = vsel %vm1285, %v1186, 0.0
        %v1318 = vsel %vm1286, %v1187, 0.0
        %v1319 = vsel %vm1287, %v1188, 0.0
        %v1320 = vsel %vm1288, %v1189, 0.0
        %v1321 = vsel %vm1289, %v1190, 0.0
        %v1322 = vsel %vm1290, %v1191, 0.0
        %v1323 = vsel %vm1291, %v1192, 0.0
        %v1324 = vsel %vm1292, %v1193, 0.0
        %v1325 = vsel %vm1293, %v1194, 0.0
        %v1326 = vsel %vm1294, %v1195, 0.0
        %v1327 = vsel %vm1295, %v1196, 0.0
        %v1328 = vsel %vm1296, %v1197, 0.0
        %v1329 = vsel %vm1297, %v1198, 0.0
        %v1330 = vsel %vm1298, %v1199, 0.0
        %v1331 = vsel %vm1299, %v1200, 0.0
        %v1332 = vsel %vm1300, %v1201, 0.0
        %v1333 = vsel %vm1301, %v1202, 0.0
        %v1334 = vsel %vm1302, %v1203, 0.0
        %v1335 = vsel %vm1303, %v1204, 0.0
        %v1336 = vsel %vm1304, %v1205, 0.0
        %v1337 = vsel %vm1305, %v1206, 0.0
        %v1338 = vsel %vm1306, %v1207, 0.0
        %v1339 = vsel %vm1307, %v1208, 0.0
        %v1340 = vsel %vm1308, %v1209, 0.0
        %v1341 = vsel %vm1309, %v1210, 0.0
        %v1342 = vsel %vm1310, %v1211, 0.0
        %v1343 = vsel %vm1311, %v1212, 0.0
        %v1344 = vsel %vm1312, %v1213, 0.0
        %v1345 = vsel %vm1313, %v1214, 0.0
        %v1346 = vsel %vm1314, %v1215, 0.0
        %v1347 = vsel %vm1315, %v1216, 0.0
        %v1348 = vsel %vm1316, %v1217, 0.0
        %v1349 = vld [vmem:[#allocation7] sm:$0x1]
        %v1350 = vadd.f32 %v1317, %v1318
        %v1351 = vadd.f32 %v1350, %v1319
        %v1352 = vadd.f32 %v1351, %v1320
        %v1353 = vadd.f32 %v1352, %v1321
        %v1354 = vadd.f32 %v1353, %v1322
        %v1355 = vadd.f32 %v1354, %v1323
        %v1356 = vadd.f32 %v1355, %v1324
        %v1357 = vadd.f32 %v1356, %v1325
        %v1358 = vadd.f32 %v1357, %v1326
        %v1359 = vadd.f32 %v1358, %v1327
        %v1360 = vadd.f32 %v1359, %v1328
        %v1361 = vadd.f32 %v1360, %v1329
        %v1362 = vadd.f32 %v1361, %v1330
        %v1363 = vadd.f32 %v1362, %v1331
        %v1364 = vadd.f32 %v1363, %v1332
        %v1365 = vadd.f32 %v1364, %v1333
        %v1366 = vadd.f32 %v1365, %v1334
        %v1367 = vadd.f32 %v1366, %v1335
        %v1368 = vadd.f32 %v1367, %v1336
        %v1369 = vadd.f32 %v1368, %v1337
        %v1370 = vadd.f32 %v1369, %v1338
        %v1371 = vadd.f32 %v1370, %v1339
        %v1372 = vadd.f32 %v1371, %v1340
        %v1373 = vadd.f32 %v1372, %v1341
        %v1374 = vadd.f32 %v1373, %v1342
        %v1375 = vadd.f32 %v1374, %v1343
        %v1376 = vadd.f32 %v1375, %v1344
        %v1377 = vadd.f32 %v1376, %v1345
        %v1378 = vadd.f32 %v1377, %v1346
        %v1379 = vadd.f32 %v1378, %v1347
        %v1380 = vadd.f32 %v1379, %v1348
        %1381 = vadd.xlane.f32.xlu0 %v1380
        %v1382 = vpop.xlane.xlu0 %1381
        %v1383 = vrot.slane %v1382, 4
        %v1384 = vadd.f32 %v1382, %v1383
        %v1385 = vrot.slane %v1384, 2
        %v1386 = vadd.f32 %v1384, %v1385
        %v1387 = vrot.slane %v1386, 1
        %v1388 = vadd.f32 %v1386, %v1387
        %s1389 = vtos %v1388
        %v1390 = vstv %s1389
        %v1391 = vadd.f32 %v1349, %v1390
        %1392 = vst.msk [vmem:[#allocation7] sm:$0x1] %vm351, %v1391
        %p1393 = scmp.eq.s32.totalorder %s21, 1
        // Predicated region
        $region49: #{tpu_custom_call.1} parent=31 // pred_check
          %p1394 = pneg %p1393
        $region50: #{tpu_custom_call.1} parent=31 // pred_check_branch
          %1396 = sbr.rel (%p1394) target = $region52
        $region51: #{tpu_custom_call.1} parent=31 // pred_region
          %v1397 = vld [vmem:[#allocation2] sm:$0x1]
          %v1398 = vld [vmem:[#allocation3] sm:$0x1]
          %v1399 = vld [vmem:[#allocation4] sm:$0x1]
          %v1400 = vld [vmem:[#allocation5] sm:$0x1]
          %v1401 = vld [vmem:[#allocation6] sm:$0x1]
          %v1402 = vmul.f32 %v1401, 49152.0
          %v1403 = vmul.f32 %v1397, %v1398
          %v1404 = vsub.f32 %v1402, %v1403
          %v1405 = vmul.f32 %v1399, 49152.0
          %v1406 = vmul.f32 %v1397, %v1397
          %v1407 = vsub.f32 %v1405, %v1406
          %v1408 = vmul.f32 %v1400, 49152.0
          %v1409 = vmul.f32 %v1398, %v1398
          %v1410 = vsub.f32 %v1408, %v1409
          %v1411 = vmul.f32 %v1407, %v1410
          %v1412 = vrsqrt.pop %v1411
          %v1413 = vmul.f32 %v1411, %v1412
          %vm1414 = vcmp.eq.f32.partialorder %v1411, inf
          %v1415 = vsel %vm1414, %v1411, %v1413
          %vm1416 = vcmp.eq.f32.partialorder %v1411, 0.0
          %v1417 = vand.u32 %v1411, 2147483648
          %v1418 = vsel %vm1416, %v1417, %v1415
          %v1419 = vadd.f32 %v1418, 1e-08
          %v1420 = vrcp.pop %v1419
          %v1421 = vmul.f32 %v1404, %v1420
          %v1422 = vsub.f32 1.0, %v1421
          %v1423 = vld [vmem:[#allocation7] sm:$0x1]
          %v1424 = vrcp.pop 49152.0
          %v1425 = vmul.f32 %v1423, %v1424
          %v1426 = vmul.f32 %v1422, 0.1
          %v1427 = vmul.f32 %v1425, 0.9
          %v1428 = vadd.f32 %v1426, %v1427
          %1429 = vst.msk [vmem:[#allocation14] sm:$0x1] %vm351, %v1428
        $region52: #{tpu_custom_call.1} parent=31 // pred_fallthru
          _
        // Predicated region
        $region53: #{tpu_custom_call.1} parent=31 // pred_check
          %p1430 = pneg %p107
        $region54: #{tpu_custom_call.1} parent=31 // pred_check_branch
          %1432 = sbr.rel (%p1430) target = $region56
        $region55: #{tpu_custom_call.1} parent=31 // pred_region
          %s1434 = ssub.s32 16, 16
          %1435 = vsyncadd [#allocation10], %s1434
          %s1437 = sshll.u32 [#allocation14], 4
          %s1438 = int_to_ptr.vmem [resolvable:$true] %s1437
          %1440 = dma.vmem_to_hbm [thread:$0]  %s1438, 16, %s3, [#allocation10]
        $region56: #{tpu_custom_call.1} parent=31 // pred_fallthru
          _
        // Predicated region
        $region57: #{tpu_custom_call.1} parent=31 // pred_check
          %p1441 = pneg %p107
        $region58: #{tpu_custom_call.1} parent=31 // pred_check_branch
          %1443 = sbr.rel (%p1441) target = $region60
        $region59: #{tpu_custom_call.1} parent=31 // pred_region
          %1444 = dma.done [#allocation10], 16
        $region60: #{tpu_custom_call.1} parent=31 // pred_fallthru
          _
      $region32: #{tpu_custom_call.1} parent=5 // pred_fallthru
        _
      %p1445 = scmp.le.s32.totalorder 2, %s16
      // Predicated region
      $region61: #{tpu_custom_call.1} parent=5 // pred_check
        %p1446 = pneg %p1445
      $region62: #{tpu_custom_call.1} parent=5 // pred_check_branch
        %1448 = sbr.rel (%p1446) target = $region64
      $region63: #{tpu_custom_call.1} parent=5 // pred_region
        %s1449 = ssub.s32 %s16, 2
      $region64: #{tpu_custom_call.1} parent=5 // pred_fallthru
        _
    $region6: #{tpu_custom_call.1} parent=1 // loop_footer
      %s20 = sadd.s32 1, %s16
    $region7: #{tpu_custom_call.1} parent=1 // loop_footer_branch
      %15 = sbr.rel target = $region3
    $region8: #{tpu_custom_call.1} parent=1 // loop_exit
      _
    %1450 = vsyncpa [#allocation9], 1
    %s1451 = scalar_lea.sflag [#allocation9], 1
    %1452 = vsyncpa %s1451, 1
    %1453 = vsyncpa [#allocation12], 1
    %s1454 = scalar_lea.sflag [#allocation12], 1
    %1455 = vsyncpa %s1454, 1
    %1456 = vsyncpa [#allocation10], 1
    %s1457 = scalar_lea.sflag [#allocation10], 1
    %1458 = vsyncpa %s1457, 1

</llo_original>
